<compile_context>
chip_gen: v7x
topology: tpu7x:2x2x1
jax: 0.10.0
libtpu: 0.0.40
codegen_flags: <defaults>
</compile_context>

<pallas_src>
import numpy as np
import jax
import jax.numpy as jnp
from jax.experimental import pallas as pl
from jax.experimental.pallas import tpu as pltpu


def _psroi_kernel(bidx_ref, feat_ref, bounds_ref, out_ref):
    # bidx_ref:   (N_pad,) int32 SMEM (scalar prefetch): batch index per ROI.
    # feat_ref:   (B, H, W, Cp) features, resident across the grid (constant index_map).
    # bounds_ref: (4, TN, Cp) int32: [hstart, hend, wstart, wend] per ROI / per PS-channel.
    # out_ref:    (TN, Cp) float32 pooled outputs for this block of ROIs.
    B, H, W, Cp = feat_ref.shape
    TN = out_ref.shape[0]
    base = pl.program_id(0) * TN

    h_iota = jax.lax.broadcasted_iota(jnp.int32, (H, 1, Cp), 0)   # (H, 1, Cp)
    w_iota = jax.lax.broadcasted_iota(jnp.int32, (W, Cp), 0)      # (W, Cp)

    for r in range(TN):  # static unroll over the ROI tile
        b = bidx_ref[base + r]

        hs = bounds_ref[0, r:r + 1, :]   # (1, Cp)
        he = bounds_ref[1, r:r + 1, :]
        ws = bounds_ref[2, r:r + 1, :]
        we = bounds_ref[3, r:r + 1, :]

        hmask = jnp.logical_and(h_iota >= hs[None], h_iota < he[None]).astype(jnp.float32)  # (H,1,Cp)
        wmask = jnp.logical_and(w_iota >= ws, w_iota < we).astype(jnp.float32)              # (W,Cp)

        feat = feat_ref[b].astype(jnp.float32)                  # (H, W, Cp), cast in-kernel
        # Two-stage masked reduction: H*W*Cp + W*Cp multiplies (vs 2*H*W*Cp).
        tmp = jnp.sum(feat * hmask, axis=0)                     # (W, Cp)
        pooled = jnp.sum(tmp * wmask, axis=0, keepdims=True)    # (1, Cp)

        area = ((he - hs) * (we - ws)).astype(jnp.float32)      # (1, Cp)
        empty = jnp.logical_or(he <= hs, we <= ws)
        inv_area = jnp.where(empty, 0.0, 1.0 / jnp.maximum(area, 1.0))
        out_ref[r:r + 1, :] = (pooled * inv_area).astype(out_ref.dtype)


def _compute_bin_bounds(rois, H, W, G, spatial_scale):
    """Per-ROI integer bin bounds, faithful to the psroi_pooling CUDA kernel.

    Returns (batch_idx[N], hstart[N,G], hend[N,G], wstart[N,G], wend[N,G]) as int32.
    """
    rois = rois.astype(jnp.float32)
    batch_idx = rois[:, 0].astype(jnp.int32)
    # C-style round() (half away from zero) for the non-negative ROI coords used here.
    rnd = lambda x: jnp.floor(x + 0.5)
    rs_w = rnd(rois[:, 1]) * spatial_scale
    rs_h = rnd(rois[:, 2]) * spatial_scale
    re_w = (rnd(rois[:, 3]) + 1.0) * spatial_scale
    re_h = (rnd(rois[:, 4]) + 1.0) * spatial_scale
    roi_w = jnp.maximum(re_w - rs_w, 0.1)
    roi_h = jnp.maximum(re_h - rs_h, 0.1)
    bin_h = roi_h / G
    bin_w = roi_w / G

    g = jnp.arange(G, dtype=jnp.float32)
    hstart = jnp.clip(jnp.floor(g[None, :] * bin_h[:, None] + rs_h[:, None]), 0, H)
    hend = jnp.clip(jnp.ceil((g[None, :] + 1.0) * bin_h[:, None] + rs_h[:, None]), 0, H)
    wstart = jnp.clip(jnp.floor(g[None, :] * bin_w[:, None] + rs_w[:, None]), 0, W)
    wend = jnp.clip(jnp.ceil((g[None, :] + 1.0) * bin_w[:, None] + rs_w[:, None]), 0, W)
    return (batch_idx,
            hstart.astype(jnp.int32), hend.astype(jnp.int32),
            wstart.astype(jnp.int32), wend.astype(jnp.int32))


def psroi_pool(rois, features, stride, group_size, *, rois_per_step=8):
    """Forward of PSRoIPool: rois [N, >=5] (b, x1, y1, x2, y2), features NCHW.

    Returns [N, output_dim, group_size, group_size] with output_dim = C // group_size**2.
    """
    # Keep ROI coordinates in float32 regardless of the feature dtype (bf16/fp16 coords
    # above ~256 would lose integer precision and shift the bin boundaries).
    rois = rois[:, :5].astype(jnp.float32)
    assert rois.shape[1] == 5, rois.shape
    N = rois.shape[0]
    B, Cin, H, W = features.shape
    G = int(group_size)
    assert Cin % (G * G) == 0
    output_dim = Cin // (G * G)
    spatial_scale = 1.0 / float(stride)

    batch_idx, hstart, hend, wstart, wend = _compute_bin_bounds(rois, H, W, G, spatial_scale)

    LANE = 128
    Cp = ((Cin + LANE - 1) // LANE) * LANE
    TN = int(rois_per_step)
    N_pad = ((N + TN - 1) // TN) * TN

    # Expand (N, G) bounds to the padded per-channel axis:  c = (ctop*G + ph)*G + pw.
    c = jnp.arange(Cp)
    ph_c = (c // G) % G
    pw_c = c % G
    valid = (c < Cin)[None, :]
    hs_c = jnp.where(valid, hstart[:, ph_c], 0)
    he_c = jnp.where(valid, hend[:, ph_c], 0)     # pad channels: he<=hs -> pooled output 0
    ws_c = jnp.where(valid, wstart[:, pw_c], 0)
    we_c = jnp.where(valid, wend[:, pw_c], 0)
    bounds = jnp.stack([hs_c, he_c, ws_c, we_c], axis=0).astype(jnp.int32)   # (4, N, Cp)
    if N_pad != N:
        bounds = jnp.pad(bounds, ((0, 0), (0, N_pad - N), (0, 0)))           # pad ROIs -> empty bins
        batch_idx = jnp.pad(batch_idx, (0, N_pad - N))
    batch_idx = batch_idx.astype(jnp.int32)

    # NHWC so the channel axis is lane-dense; keep native dtype for the HBM->VMEM DMA
    # (cast to f32 happens inside the kernel).
    # TODO(synk): accept NHWC features directly to avoid the standalone transpose pass.
    feat_nhwc = jnp.transpose(features, (0, 2, 3, 1))
    if Cp != Cin:
        feat_nhwc = jnp.pad(feat_nhwc, ((0, 0), (0, 0), (0, 0), (0, Cp - Cin)))

    n_blocks = N_pad // TN
    grid_spec = pltpu.PrefetchScalarGridSpec(
        num_scalar_prefetch=1,
        grid=(n_blocks,),
        in_specs=[
            # Whole-batch feature block with a constant index_map: DMA'd once, then resident.
            pl.BlockSpec((B, H, W, Cp), lambda i, bidx: (0, 0, 0, 0)),
            # Packed per-ROI, per-channel bin bounds for this block of TN ROIs.
            pl.BlockSpec((4, TN, Cp), lambda i, bidx: (0, i, 0)),
        ],
        out_specs=pl.BlockSpec((TN, Cp), lambda i, bidx: (i, 0)),
    )

    feat_bytes = int(np.prod(feat_nhwc.shape)) * feat_nhwc.dtype.itemsize
    vmem_limit = int(min(96 * 2**20, max(32 * 2**20, 2 * feat_bytes + (8 << 20))))

    out = pl.pallas_call(
        _psroi_kernel,
        out_shape=jax.ShapeDtypeStruct((N_pad, Cp), jnp.float32),
        grid_spec=grid_spec,
        compiler_params=pltpu.CompilerParams(
            dimension_semantics=("parallel",),   # ROI blocks are independent (2 TCs on v7x)
            vmem_limit_bytes=vmem_limit,
        ),
    )(batch_idx, feat_nhwc, bounds)

    out = out[:N, :Cin].reshape(N, output_dim, G, G)
    return out.astype(features.dtype)


class PSRoIPool:
    """Mirror of the PyTorch module interface (no learnable parameters)."""

    def __init__(self, group_size, output_dim=None, spatial_scale=None):
        self.group_size = int(group_size)

    def __call__(self, rois, features, stride):
        return psroi_pool(rois, features, stride, self.group_size)


def psroi_pool_ref(rois, features, stride, group_size):
    """Pure NumPy loop reference (validates the kernel's masked reduction)."""
    feats = np.asarray(features, np.float64)
    N = rois.shape[0]
    _, C, H, W = feats.shape
    G = int(group_size)
    OD = C // (G * G)
    bidx, hs, he, ws, we = (np.asarray(a) for a in _compute_bin_bounds(
        jnp.asarray(rois, jnp.float32), H, W, G, 1.0 / float(stride)))
    out = np.zeros((N, OD, G, G), np.float64)
    for n in range(N):
        b = int(bidx[n])
        for ctop in range(OD):
            for ph in range(G):
                for pw in range(G):
                    h0, h1 = int(hs[n, ph]), int(he[n, ph])
                    w0, w1 = int(ws[n, pw]), int(we[n, pw])
                    if h1 <= h0 or w1 <= w0:
                        continue
                    ch = (ctop * G + ph) * G + pw
                    region = feats[b, ch, h0:h1, w0:w1]
                    out[n, ctop, ph, pw] = region.sum() / float((h1 - h0) * (w1 - w0))
    return out


if __name__ == "__main__":
    key = jax.random.PRNGKey(0)
    k_feat, k_b, k_xy, k_wh = jax.random.split(key, 4)

    G = 3
    output_dim = 4
    B, H, W = 2, 16, 16
    Cin = output_dim * G * G          # 36 position-sensitive channels
    N = 6                             # number of rois
    stride = 8.0                      # feature stride -> spatial_scale = 1/8

    features = jax.random.normal(k_feat, (B, Cin, H, W), dtype=jnp.float32)
    bidx = jax.random.randint(k_b, (N, 1), 0, B).astype(jnp.float32)
    xy = jnp.floor(jax.random.uniform(k_xy, (N, 2), minval=0.0, maxval=80.0))
    wh = jnp.floor(jax.random.uniform(k_wh, (N, 2), minval=8.0, maxval=48.0))
    x1y1 = xy
    x2y2 = jnp.clip(xy + wh, 0.0, jnp.array([W * stride - 1.0, H * stride - 1.0]))
    rois = jnp.concatenate(
        [bidx, x1y1[:, 0:1], x1y1[:, 1:2], x2y2[:, 0:1], x2y2[:, 1:2]], axis=1)

    pool = PSRoIPool(group_size=G)
    out = pool(rois, features, stride)
    out = jax.block_until_ready(out)

    assert out.shape == (N, output_dim, G, G), out.shape
    ref = psroi_pool_ref(np.asarray(rois), np.asarray(features), stride, G)
    np.testing.assert_allclose(np.asarray(out, np.float64), ref, rtol=1e-4, atol=1e-4)

    print("KERNEL_OK")
</pallas_src>

<mosaic_0001>
module attributes {stable_mosaic.version = 11 : i64} {
  func.func @_psroi_kernel(%arg0: i32, %arg1: memref<8xi32, #tpu.memory_space<smem>>, %arg2: memref<2x16x16x128xf32, #tpu.memory_space<vmem>>, %arg3: memref<4x8x128xi32, #tpu.memory_space<vmem>>, %arg4: memref<8x128xf32, #tpu.memory_space<vmem>>) attributes {dimension_semantics = [#tpu.dimension_semantics<parallel>], iteration_bounds = array<i64: 1>, scalar_prefetch = 1 : i64, scratch_operands = 0 : i64, tpu.core_type = #tpu.core_type<tc>, window_params = [{pipeline_mode = #tpu.pipeline_mode<synchronous>, transform_indices = @transform_0, window_bounds = array<i64: 2, 16, 16, 128>}, {transform_indices = @transform_1, window_bounds = array<i64: 4, 8, 128>}, {transform_indices = @transform_2, window_bounds = array<i64: 8, 128>}]} {
    %c8_i32 = arith.constant 8 : i32
    %0 = arith.muli %arg0, %c8_i32 : i32
    %1 = tpu.iota {dimensions = array<i32: 0>} : vector<16x1x128xi32>
    %2 = tpu.iota {dimensions = array<i32: 0>} : vector<16x128xi32>
    %c0_i32 = arith.constant 0 : i32
    %3 = arith.addi %0, %c0_i32 : i32
    %4 = arith.index_cast %3 : i32 to index
    %5 = memref.load %arg1[%4] : memref<8xi32, #tpu.memory_space<smem>>
    %c0 = arith.constant 0 : index
    %c0_0 = arith.constant 0 : index
    %c0_1 = arith.constant 0 : index
    %6 = vector.load %arg3[%c0, %c0_0, %c0_1] : memref<4x8x128xi32, #tpu.memory_space<vmem>>, vector<1x1x128xi32>
    %7 = vector.shape_cast %6 : vector<1x1x128xi32> to vector<1x128xi32>
    %c1 = arith.constant 1 : index
    %c0_2 = arith.constant 0 : index
    %c0_3 = arith.constant 0 : index
    %8 = vector.load %arg3[%c1, %c0_2, %c0_3] : memref<4x8x128xi32, #tpu.memory_space<vmem>>, vector<1x1x128xi32>
    %9 = vector.shape_cast %8 : vector<1x1x128xi32> to vector<1x128xi32>
    %c2 = arith.constant 2 : index
    %c0_4 = arith.constant 0 : index
    %c0_5 = arith.constant 0 : index
    %10 = vector.load %arg3[%c2, %c0_4, %c0_5] : memref<4x8x128xi32, #tpu.memory_space<vmem>>, vector<1x1x128xi32>
    %11 = vector.shape_cast %10 : vector<1x1x128xi32> to vector<1x128xi32>
    %c3 = arith.constant 3 : index
    %c0_6 = arith.constant 0 : index
    %c0_7 = arith.constant 0 : index
    %12 = vector.load %arg3[%c3, %c0_6, %c0_7] : memref<4x8x128xi32, #tpu.memory_space<vmem>>, vector<1x1x128xi32>
    %13 = vector.shape_cast %12 : vector<1x1x128xi32> to vector<1x128xi32>
    %14 = vector.shape_cast %7 : vector<1x128xi32> to vector<1x1x128xi32>
    %15 = vector.broadcast %14 : vector<1x1x128xi32> to vector<16x1x128xi32>
    %16 = arith.cmpi sge, %1, %15 : vector<16x1x128xi32>
    %17 = vector.shape_cast %9 : vector<1x128xi32> to vector<1x1x128xi32>
    %18 = vector.broadcast %17 : vector<1x1x128xi32> to vector<16x1x128xi32>
    %19 = arith.cmpi slt, %1, %18 : vector<16x1x128xi32>
    %20 = arith.andi %16, %19 : vector<16x1x128xi1>
    %21 = arith.extui %20 : vector<16x1x128xi1> to vector<16x1x128xi32>
    %22 = arith.sitofp %21 : vector<16x1x128xi32> to vector<16x1x128xf32>
    %23 = vector.broadcast %11 : vector<1x128xi32> to vector<16x128xi32>
    %24 = arith.cmpi sge, %2, %23 : vector<16x128xi32>
    %25 = vector.broadcast %13 : vector<1x128xi32> to vector<16x128xi32>
    %26 = arith.cmpi slt, %2, %25 : vector<16x128xi32>
    %27 = arith.andi %24, %26 : vector<16x128xi1>
    %28 = arith.extui %27 : vector<16x128xi1> to vector<16x128xi32>
    %29 = arith.sitofp %28 : vector<16x128xi32> to vector<16x128xf32>
    %30 = arith.index_cast %5 : i32 to index
    %c0_8 = arith.constant 0 : index
    %c0_9 = arith.constant 0 : index
    %c0_10 = arith.constant 0 : index
    %31 = vector.load %arg2[%30, %c0_8, %c0_9, %c0_10] : memref<2x16x16x128xf32, #tpu.memory_space<vmem>>, vector<1x16x16x128xf32>
    %32 = vector.shape_cast %31 : vector<1x16x16x128xf32> to vector<16x16x128xf32>
    %33 = vector.broadcast %22 : vector<16x1x128xf32> to vector<16x16x128xf32>
    %34 = arith.mulf %32, %33 : vector<16x16x128xf32>
    %cst = arith.constant dense<0.000000e+00> : vector<16x128xf32>
    %35 = vector.multi_reduction <add>, %34, %cst [0] : vector<16x16x128xf32> to vector<16x128xf32>
    %36 = arith.mulf %35, %29 : vector<16x128xf32>
    %cst_11 = arith.constant dense<0.000000e+00> : vector<128xf32>
    %37 = vector.multi_reduction <add>, %36, %cst_11 [0] : vector<16x128xf32> to vector<128xf32>
    %38 = vector.shape_cast %37 : vector<128xf32> to vector<1x128xf32>
    %39 = arith.subi %9, %7 : vector<1x128xi32>
    %40 = arith.subi %13, %11 : vector<1x128xi32>
    %41 = arith.muli %39, %40 : vector<1x128xi32>
    %42 = arith.sitofp %41 : vector<1x128xi32> to vector<1x128xf32>
    %43 = arith.cmpi sle, %9, %7 : vector<1x128xi32>
    %44 = arith.cmpi sle, %13, %11 : vector<1x128xi32>
    %45 = arith.ori %43, %44 : vector<1x128xi1>
    %cst_12 = arith.constant 1.000000e+00 : f32
    %46 = vector.broadcast %cst_12 : f32 to vector<1x128xf32>
    %47 = arith.maximumf %42, %46 : vector<1x128xf32>
    %cst_13 = arith.constant 1.000000e+00 : f32
    %48 = vector.broadcast %cst_13 : f32 to vector<1x128xf32>
    %49 = arith.divf %48, %47 : vector<1x128xf32>
    %cst_14 = arith.constant 0.000000e+00 : f32
    %50 = vector.broadcast %cst_14 : f32 to vector<1x128xf32>
    %51 = arith.select %45, %50, %49 : vector<1x128xi1>, vector<1x128xf32>
    %52 = arith.mulf %38, %51 : vector<1x128xf32>
    %c0_15 = arith.constant 0 : index
    %c0_16 = arith.constant 0 : index
    %53 = vector.load %arg4[%c0_15, %c0_16] : memref<8x128xf32, #tpu.memory_space<vmem>>, vector<1x128xf32>
    tpu.vector_store %arg4[%c0_15, %c0_16], %52 {strides = array<i32>} : memref<8x128xf32, #tpu.memory_space<vmem>>, vector<1x128xf32>,
    %c1_i32 = arith.constant 1 : i32
    %54 = arith.addi %0, %c1_i32 : i32
    %55 = arith.index_cast %54 : i32 to index
    %56 = memref.load %arg1[%55] : memref<8xi32, #tpu.memory_space<smem>>
    %c0_17 = arith.constant 0 : index
    %c1_18 = arith.constant 1 : index
    %c0_19 = arith.constant 0 : index
    %57 = vector.load %arg3[%c0_17, %c1_18, %c0_19] : memref<4x8x128xi32, #tpu.memory_space<vmem>>, vector<1x1x128xi32>
    %58 = vector.shape_cast %57 : vector<1x1x128xi32> to vector<1x128xi32>
    %c1_20 = arith.constant 1 : index
    %c1_21 = arith.constant 1 : index
    %c0_22 = arith.constant 0 : index
    %59 = vector.load %arg3[%c1_20, %c1_21, %c0_22] : memref<4x8x128xi32, #tpu.memory_space<vmem>>, vector<1x1x128xi32>
    %60 = vector.shape_cast %59 : vector<1x1x128xi32> to vector<1x128xi32>
    %c2_23 = arith.constant 2 : index
    %c1_24 = arith.constant 1 : index
    %c0_25 = arith.constant 0 : index
    %61 = vector.load %arg3[%c2_23, %c1_24, %c0_25] : memref<4x8x128xi32, #tpu.memory_space<vmem>>, vector<1x1x128xi32>
    %62 = vector.shape_cast %61 : vector<1x1x128xi32> to vector<1x128xi32>
    %c3_26 = arith.constant 3 : index
    %c1_27 = arith.constant 1 : index
    %c0_28 = arith.constant 0 : index
    %63 = vector.load %arg3[%c3_26, %c1_27, %c0_28] : memref<4x8x128xi32, #tpu.memory_space<vmem>>, vector<1x1x128xi32>
    %64 = vector.shape_cast %63 : vector<1x1x128xi32> to vector<1x128xi32>
    %65 = vector.shape_cast %58 : vector<1x128xi32> to vector<1x1x128xi32>
    %66 = vector.broadcast %65 : vector<1x1x128xi32> to vector<16x1x128xi32>
    %67 = arith.cmpi sge, %1, %66 : vector<16x1x128xi32>
    %68 = vector.shape_cast %60 : vector<1x128xi32> to vector<1x1x128xi32>
    %69 = vector.broadcast %68 : vector<1x1x128xi32> to vector<16x1x128xi32>
    %70 = arith.cmpi slt, %1, %69 : vector<16x1x128xi32>
    %71 = arith.andi %67, %70 : vector<16x1x128xi1>
    %72 = arith.extui %71 : vector<16x1x128xi1> to vector<16x1x128xi32>
    %73 = arith.sitofp %72 : vector<16x1x128xi32> to vector<16x1x128xf32>
    %74 = vector.broadcast %62 : vector<1x128xi32> to vector<16x128xi32>
    %75 = arith.cmpi sge, %2, %74 : vector<16x128xi32>
    %76 = vector.broadcast %64 : vector<1x128xi32> to vector<16x128xi32>
    %77 = arith.cmpi slt, %2, %76 : vector<16x128xi32>
    %78 = arith.andi %75, %77 : vector<16x128xi1>
    %79 = arith.extui %78 : vector<16x128xi1> to vector<16x128xi32>
    %80 = arith.sitofp %79 : vector<16x128xi32> to vector<16x128xf32>
    %81 = arith.index_cast %56 : i32 to index
    %c0_29 = arith.constant 0 : index
    %c0_30 = arith.constant 0 : index
    %c0_31 = arith.constant 0 : index
    %82 = vector.load %arg2[%81, %c0_29, %c0_30, %c0_31] : memref<2x16x16x128xf32, #tpu.memory_space<vmem>>, vector<1x16x16x128xf32>
    %83 = vector.shape_cast %82 : vector<1x16x16x128xf32> to vector<16x16x128xf32>
    %84 = vector.broadcast %73 : vector<16x1x128xf32> to vector<16x16x128xf32>
    %85 = arith.mulf %83, %84 : vector<16x16x128xf32>
    %cst_32 = arith.constant dense<0.000000e+00> : vector<16x128xf32>
    %86 = vector.multi_reduction <add>, %85, %cst_32 [0] : vector<16x16x128xf32> to vector<16x128xf32>
    %87 = arith.mulf %86, %80 : vector<16x128xf32>
    %cst_33 = arith.constant dense<0.000000e+00> : vector<128xf32>
    %88 = vector.multi_reduction <add>, %87, %cst_33 [0] : vector<16x128xf32> to vector<128xf32>
    %89 = vector.shape_cast %88 : vector<128xf32> to vector<1x128xf32>
    %90 = arith.subi %60, %58 : vector<1x128xi32>
    %91 = arith.subi %64, %62 : vector<1x128xi32>
    %92 = arith.muli %90, %91 : vector<1x128xi32>
    %93 = arith.sitofp %92 : vector<1x128xi32> to vector<1x128xf32>
    %94 = arith.cmpi sle, %60, %58 : vector<1x128xi32>
    %95 = arith.cmpi sle, %64, %62 : vector<1x128xi32>
    %96 = arith.ori %94, %95 : vector<1x128xi1>
    %cst_34 = arith.constant 1.000000e+00 : f32
    %97 = vector.broadcast %cst_34 : f32 to vector<1x128xf32>
    %98 = arith.maximumf %93, %97 : vector<1x128xf32>
    %cst_35 = arith.constant 1.000000e+00 : f32
    %99 = vector.broadcast %cst_35 : f32 to vector<1x128xf32>
    %100 = arith.divf %99, %98 : vector<1x128xf32>
    %cst_36 = arith.constant 0.000000e+00 : f32
    %101 = vector.broadcast %cst_36 : f32 to vector<1x128xf32>
    %102 = arith.select %96, %101, %100 : vector<1x128xi1>, vector<1x128xf32>
    %103 = arith.mulf %89, %102 : vector<1x128xf32>
    %c1_37 = arith.constant 1 : index
    %c0_38 = arith.constant 0 : index
    %104 = vector.load %arg4[%c1_37, %c0_38] : memref<8x128xf32, #tpu.memory_space<vmem>>, vector<1x128xf32>
    tpu.vector_store %arg4[%c1_37, %c0_38], %103 {strides = array<i32>} : memref<8x128xf32, #tpu.memory_space<vmem>>, vector<1x128xf32>,
    %c2_i32 = arith.constant 2 : i32
    %105 = arith.addi %0, %c2_i32 : i32
    %106 = arith.index_cast %105 : i32 to index
    %107 = memref.load %arg1[%106] : memref<8xi32, #tpu.memory_space<smem>>
    %c0_39 = arith.constant 0 : index
    %c2_40 = arith.constant 2 : index
    %c0_41 = arith.constant 0 : index
    %108 = vector.load %arg3[%c0_39, %c2_40, %c0_41] : memref<4x8x128xi32, #tpu.memory_space<vmem>>, vector<1x1x128xi32>
    %109 = vector.shape_cast %108 : vector<1x1x128xi32> to vector<1x128xi32>
    %c1_42 = arith.constant 1 : index
    %c2_43 = arith.constant 2 : index
    %c0_44 = arith.constant 0 : index
    %110 = vector.load %arg3[%c1_42, %c2_43, %c0_44] : memref<4x8x128xi32, #tpu.memory_space<vmem>>, vector<1x1x128xi32>
    %111 = vector.shape_cast %110 : vector<1x1x128xi32> to vector<1x128xi32>
    %c2_45 = arith.constant 2 : index
    %c2_46 = arith.constant 2 : index
    %c0_47 = arith.constant 0 : index
    %112 = vector.load %arg3[%c2_45, %c2_46, %c0_47] : memref<4x8x128xi32, #tpu.memory_space<vmem>>, vector<1x1x128xi32>
    %113 = vector.shape_cast %112 : vector<1x1x128xi32> to vector<1x128xi32>
    %c3_48 = arith.constant 3 : index
    %c2_49 = arith.constant 2 : index
    %c0_50 = arith.constant 0 : index
    %114 = vector.load %arg3[%c3_48, %c2_49, %c0_50] : memref<4x8x128xi32, #tpu.memory_space<vmem>>, vector<1x1x128xi32>
    %115 = vector.shape_cast %114 : vector<1x1x128xi32> to vector<1x128xi32>
    %116 = vector.shape_cast %109 : vector<1x128xi32> to vector<1x1x128xi32>
    %117 = vector.broadcast %116 : vector<1x1x128xi32> to vector<16x1x128xi32>
    %118 = arith.cmpi sge, %1, %117 : vector<16x1x128xi32>
    %119 = vector.shape_cast %111 : vector<1x128xi32> to vector<1x1x128xi32>
    %120 = vector.broadcast %119 : vector<1x1x128xi32> to vector<16x1x128xi32>
    %121 = arith.cmpi slt, %1, %120 : vector<16x1x128xi32>
    %122 = arith.andi %118, %121 : vector<16x1x128xi1>
    %123 = arith.extui %122 : vector<16x1x128xi1> to vector<16x1x128xi32>
    %124 = arith.sitofp %123 : vector<16x1x128xi32> to vector<16x1x128xf32>
    %125 = vector.broadcast %113 : vector<1x128xi32> to vector<16x128xi32>
    %126 = arith.cmpi sge, %2, %125 : vector<16x128xi32>
    %127 = vector.broadcast %115 : vector<1x128xi32> to vector<16x128xi32>
    %128 = arith.cmpi slt, %2, %127 : vector<16x128xi32>
    %129 = arith.andi %126, %128 : vector<16x128xi1>
    %130 = arith.extui %129 : vector<16x128xi1> to vector<16x128xi32>
    %131 = arith.sitofp %130 : vector<16x128xi32> to vector<16x128xf32>
    %132 = arith.index_cast %107 : i32 to index
    %c0_51 = arith.constant 0 : index
    %c0_52 = arith.constant 0 : index
    %c0_53 = arith.constant 0 : index
    %133 = vector.load %arg2[%132, %c0_51, %c0_52, %c0_53] : memref<2x16x16x128xf32, #tpu.memory_space<vmem>>, vector<1x16x16x128xf32>
    %134 = vector.shape_cast %133 : vector<1x16x16x128xf32> to vector<16x16x128xf32>
    %135 = vector.broadcast %124 : vector<16x1x128xf32> to vector<16x16x128xf32>
    %136 = arith.mulf %134, %135 : vector<16x16x128xf32>
    %cst_54 = arith.constant dense<0.000000e+00> : vector<16x128xf32>
    %137 = vector.multi_reduction <add>, %136, %cst_54 [0] : vector<16x16x128xf32> to vector<16x128xf32>
    %138 = arith.mulf %137, %131 : vector<16x128xf32>
    %cst_55 = arith.constant dense<0.000000e+00> : vector<128xf32>
    %139 = vector.multi_reduction <add>, %138, %cst_55 [0] : vector<16x128xf32> to vector<128xf32>
    %140 = vector.shape_cast %139 : vector<128xf32> to vector<1x128xf32>
    %141 = arith.subi %111, %109 : vector<1x128xi32>
    %142 = arith.subi %115, %113 : vector<1x128xi32>
    %143 = arith.muli %141, %142 : vector<1x128xi32>
    %144 = arith.sitofp %143 : vector<1x128xi32> to vector<1x128xf32>
    %145 = arith.cmpi sle, %111, %109 : vector<1x128xi32>
    %146 = arith.cmpi sle, %115, %113 : vector<1x128xi32>
    %147 = arith.ori %145, %146 : vector<1x128xi1>
    %cst_56 = arith.constant 1.000000e+00 : f32
    %148 = vector.broadcast %cst_56 : f32 to vector<1x128xf32>
    %149 = arith.maximumf %144, %148 : vector<1x128xf32>
    %cst_57 = arith.constant 1.000000e+00 : f32
    %150 = vector.broadcast %cst_57 : f32 to vector<1x128xf32>
    %151 = arith.divf %150, %149 : vector<1x128xf32>
    %cst_58 = arith.constant 0.000000e+00 : f32
    %152 = vector.broadcast %cst_58 : f32 to vector<1x128xf32>
    %153 = arith.select %147, %152, %151 : vector<1x128xi1>, vector<1x128xf32>
    %154 = arith.mulf %140, %153 : vector<1x128xf32>
    %c2_59 = arith.constant 2 : index
    %c0_60 = arith.constant 0 : index
    %155 = vector.load %arg4[%c2_59, %c0_60] : memref<8x128xf32, #tpu.memory_space<vmem>>, vector<1x128xf32>
    tpu.vector_store %arg4[%c2_59, %c0_60], %154 {strides = array<i32>} : memref<8x128xf32, #tpu.memory_space<vmem>>, vector<1x128xf32>,
    %c3_i32 = arith.constant 3 : i32
    %156 = arith.addi %0, %c3_i32 : i32
    %157 = arith.index_cast %156 : i32 to index
    %158 = memref.load %arg1[%157] : memref<8xi32, #tpu.memory_space<smem>>
    %c0_61 = arith.constant 0 : index
    %c3_62 = arith.constant 3 : index
    %c0_63 = arith.constant 0 : index
    %159 = vector.load %arg3[%c0_61, %c3_62, %c0_63] : memref<4x8x128xi32, #tpu.memory_space<vmem>>, vector<1x1x128xi32>
    %160 = vector.shape_cast %159 : vector<1x1x128xi32> to vector<1x128xi32>
    %c1_64 = arith.constant 1 : index
    %c3_65 = arith.constant 3 : index
    %c0_66 = arith.constant 0 : index
    %161 = vector.load %arg3[%c1_64, %c3_65, %c0_66] : memref<4x8x128xi32, #tpu.memory_space<vmem>>, vector<1x1x128xi32>
    %162 = vector.shape_cast %161 : vector<1x1x128xi32> to vector<1x128xi32>
    %c2_67 = arith.constant 2 : index
    %c3_68 = arith.constant 3 : index
    %c0_69 = arith.constant 0 : index
    %163 = vector.load %arg3[%c2_67, %c3_68, %c0_69] : memref<4x8x128xi32, #tpu.memory_space<vmem>>, vector<1x1x128xi32>
    %164 = vector.shape_cast %163 : vector<1x1x128xi32> to vector<1x128xi32>
    %c3_70 = arith.constant 3 : index
    %c3_71 = arith.constant 3 : index
    %c0_72 = arith.constant 0 : index
    %165 = vector.load %arg3[%c3_70, %c3_71, %c0_72] : memref<4x8x128xi32, #tpu.memory_space<vmem>>, vector<1x1x128xi32>
    %166 = vector.shape_cast %165 : vector<1x1x128xi32> to vector<1x128xi32>
    %167 = vector.shape_cast %160 : vector<1x128xi32> to vector<1x1x128xi32>
    %168 = vector.broadcast %167 : vector<1x1x128xi32> to vector<16x1x128xi32>
    %169 = arith.cmpi sge, %1, %168 : vector<16x1x128xi32>
    %170 = vector.shape_cast %162 : vector<1x128xi32> to vector<1x1x128xi32>
    %171 = vector.broadcast %170 : vector<1x1x128xi32> to vector<16x1x128xi32>
    %172 = arith.cmpi slt, %1, %171 : vector<16x1x128xi32>
    %173 = arith.andi %169, %172 : vector<16x1x128xi1>
    %174 = arith.extui %173 : vector<16x1x128xi1> to vector<16x1x128xi32>
    %175 = arith.sitofp %174 : vector<16x1x128xi32> to vector<16x1x128xf32>
    %176 = vector.broadcast %164 : vector<1x128xi32> to vector<16x128xi32>
    %177 = arith.cmpi sge, %2, %176 : vector<16x128xi32>
    %178 = vector.broadcast %166 : vector<1x128xi32> to vector<16x128xi32>
    %179 = arith.cmpi slt, %2, %178 : vector<16x128xi32>
    %180 = arith.andi %177, %179 : vector<16x128xi1>
    %181 = arith.extui %180 : vector<16x128xi1> to vector<16x128xi32>
    %182 = arith.sitofp %181 : vector<16x128xi32> to vector<16x128xf32>
    %183 = arith.index_cast %158 : i32 to index
    %c0_73 = arith.constant 0 : index
    %c0_74 = arith.constant 0 : index
    %c0_75 = arith.constant 0 : index
    %184 = vector.load %arg2[%183, %c0_73, %c0_74, %c0_75] : memref<2x16x16x128xf32, #tpu.memory_space<vmem>>, vector<1x16x16x128xf32>
    %185 = vector.shape_cast %184 : vector<1x16x16x128xf32> to vector<16x16x128xf32>
    %186 = vector.broadcast %175 : vector<16x1x128xf32> to vector<16x16x128xf32>
    %187 = arith.mulf %185, %186 : vector<16x16x128xf32>
    %cst_76 = arith.constant dense<0.000000e+00> : vector<16x128xf32>
    %188 = vector.multi_reduction <add>, %187, %cst_76 [0] : vector<16x16x128xf32> to vector<16x128xf32>
    %189 = arith.mulf %188, %182 : vector<16x128xf32>
    %cst_77 = arith.constant dense<0.000000e+00> : vector<128xf32>
    %190 = vector.multi_reduction <add>, %189, %cst_77 [0] : vector<16x128xf32> to vector<128xf32>
    %191 = vector.shape_cast %190 : vector<128xf32> to vector<1x128xf32>
    %192 = arith.subi %162, %160 : vector<1x128xi32>
    %193 = arith.subi %166, %164 : vector<1x128xi32>
    %194 = arith.muli %192, %193 : vector<1x128xi32>
    %195 = arith.sitofp %194 : vector<1x128xi32> to vector<1x128xf32>
    %196 = arith.cmpi sle, %162, %160 : vector<1x128xi32>
    %197 = arith.cmpi sle, %166, %164 : vector<1x128xi32>
    %198 = arith.ori %196, %197 : vector<1x128xi1>
    %cst_78 = arith.constant 1.000000e+00 : f32
    %199 = vector.broadcast %cst_78 : f32 to vector<1x128xf32>
    %200 = arith.maximumf %195, %199 : vector<1x128xf32>
    %cst_79 = arith.constant 1.000000e+00 : f32
    %201 = vector.broadcast %cst_79 : f32 to vector<1x128xf32>
    %202 = arith.divf %201, %200 : vector<1x128xf32>
    %cst_80 = arith.constant 0.000000e+00 : f32
    %203 = vector.broadcast %cst_80 : f32 to vector<1x128xf32>
    %204 = arith.select %198, %203, %202 : vector<1x128xi1>, vector<1x128xf32>
    %205 = arith.mulf %191, %204 : vector<1x128xf32>
    %c3_81 = arith.constant 3 : index
    %c0_82 = arith.constant 0 : index
    %206 = vector.load %arg4[%c3_81, %c0_82] : memref<8x128xf32, #tpu.memory_space<vmem>>, vector<1x128xf32>
    tpu.vector_store %arg4[%c3_81, %c0_82], %205 {strides = array<i32>} : memref<8x128xf32, #tpu.memory_space<vmem>>, vector<1x128xf32>,
    %c4_i32 = arith.constant 4 : i32
    %207 = arith.addi %0, %c4_i32 : i32
    %208 = arith.index_cast %207 : i32 to index
    %209 = memref.load %arg1[%208] : memref<8xi32, #tpu.memory_space<smem>>
    %c0_83 = arith.constant 0 : index
    %c4 = arith.constant 4 : index
    %c0_84 = arith.constant 0 : index
    %210 = vector.load %arg3[%c0_83, %c4, %c0_84] : memref<4x8x128xi32, #tpu.memory_space<vmem>>, vector<1x1x128xi32>
    %211 = vector.shape_cast %210 : vector<1x1x128xi32> to vector<1x128xi32>
    %c1_85 = arith.constant 1 : index
    %c4_86 = arith.constant 4 : index
    %c0_87 = arith.constant 0 : index
    %212 = vector.load %arg3[%c1_85, %c4_86, %c0_87] : memref<4x8x128xi32, #tpu.memory_space<vmem>>, vector<1x1x128xi32>
    %213 = vector.shape_cast %212 : vector<1x1x128xi32> to vector<1x128xi32>
    %c2_88 = arith.constant 2 : index
    %c4_89 = arith.constant 4 : index
    %c0_90 = arith.constant 0 : index
    %214 = vector.load %arg3[%c2_88, %c4_89, %c0_90] : memref<4x8x128xi32, #tpu.memory_space<vmem>>, vector<1x1x128xi32>
    %215 = vector.shape_cast %214 : vector<1x1x128xi32> to vector<1x128xi32>
    %c3_91 = arith.constant 3 : index
    %c4_92 = arith.constant 4 : index
    %c0_93 = arith.constant 0 : index
    %216 = vector.load %arg3[%c3_91, %c4_92, %c0_93] : memref<4x8x128xi32, #tpu.memory_space<vmem>>, vector<1x1x128xi32>
    %217 = vector.shape_cast %216 : vector<1x1x128xi32> to vector<1x128xi32>
    %218 = vector.shape_cast %211 : vector<1x128xi32> to vector<1x1x128xi32>
    %219 = vector.broadcast %218 : vector<1x1x128xi32> to vector<16x1x128xi32>
    %220 = arith.cmpi sge, %1, %219 : vector<16x1x128xi32>
    %221 = vector.shape_cast %213 : vector<1x128xi32> to vector<1x1x128xi32>
    %222 = vector.broadcast %221 : vector<1x1x128xi32> to vector<16x1x128xi32>
    %223 = arith.cmpi slt, %1, %222 : vector<16x1x128xi32>
    %224 = arith.andi %220, %223 : vector<16x1x128xi1>
    %225 = arith.extui %224 : vector<16x1x128xi1> to vector<16x1x128xi32>
    %226 = arith.sitofp %225 : vector<16x1x128xi32> to vector<16x1x128xf32>
    %227 = vector.broadcast %215 : vector<1x128xi32> to vector<16x128xi32>
    %228 = arith.cmpi sge, %2, %227 : vector<16x128xi32>
    %229 = vector.broadcast %217 : vector<1x128xi32> to vector<16x128xi32>
    %230 = arith.cmpi slt, %2, %229 : vector<16x128xi32>
    %231 = arith.andi %228, %230 : vector<16x128xi1>
    %232 = arith.extui %231 : vector<16x128xi1> to vector<16x128xi32>
    %233 = arith.sitofp %232 : vector<16x128xi32> to vector<16x128xf32>
    %234 = arith.index_cast %209 : i32 to index
    %c0_94 = arith.constant 0 : index
    %c0_95 = arith.constant 0 : index
    %c0_96 = arith.constant 0 : index
    %235 = vector.load %arg2[%234, %c0_94, %c0_95, %c0_96] : memref<2x16x16x128xf32, #tpu.memory_space<vmem>>, vector<1x16x16x128xf32>
    %236 = vector.shape_cast %235 : vector<1x16x16x128xf32> to vector<16x16x128xf32>
    %237 = vector.broadcast %226 : vector<16x1x128xf32> to vector<16x16x128xf32>
    %238 = arith.mulf %236, %237 : vector<16x16x128xf32>
    %cst_97 = arith.constant dense<0.000000e+00> : vector<16x128xf32>
    %239 = vector.multi_reduction <add>, %238, %cst_97 [0] : vector<16x16x128xf32> to vector<16x128xf32>
    %240 = arith.mulf %239, %233 : vector<16x128xf32>
    %cst_98 = arith.constant dense<0.000000e+00> : vector<128xf32>
    %241 = vector.multi_reduction <add>, %240, %cst_98 [0] : vector<16x128xf32> to vector<128xf32>
    %242 = vector.shape_cast %241 : vector<128xf32> to vector<1x128xf32>
    %243 = arith.subi %213, %211 : vector<1x128xi32>
    %244 = arith.subi %217, %215 : vector<1x128xi32>
    %245 = arith.muli %243, %244 : vector<1x128xi32>
    %246 = arith.sitofp %245 : vector<1x128xi32> to vector<1x128xf32>
    %247 = arith.cmpi sle, %213, %211 : vector<1x128xi32>
    %248 = arith.cmpi sle, %217, %215 : vector<1x128xi32>
    %249 = arith.ori %247, %248 : vector<1x128xi1>
    %cst_99 = arith.constant 1.000000e+00 : f32
    %250 = vector.broadcast %cst_99 : f32 to vector<1x128xf32>
    %251 = arith.maximumf %246, %250 : vector<1x128xf32>
    %cst_100 = arith.constant 1.000000e+00 : f32
    %252 = vector.broadcast %cst_100 : f32 to vector<1x128xf32>
    %253 = arith.divf %252, %251 : vector<1x128xf32>
    %cst_101 = arith.constant 0.000000e+00 : f32
    %254 = vector.broadcast %cst_101 : f32 to vector<1x128xf32>
    %255 = arith.select %249, %254, %253 : vector<1x128xi1>, vector<1x128xf32>
    %256 = arith.mulf %242, %255 : vector<1x128xf32>
    %c4_102 = arith.constant 4 : index
    %c0_103 = arith.constant 0 : index
    %257 = vector.load %arg4[%c4_102, %c0_103] : memref<8x128xf32, #tpu.memory_space<vmem>>, vector<1x128xf32>
    tpu.vector_store %arg4[%c4_102, %c0_103], %256 {strides = array<i32>} : memref<8x128xf32, #tpu.memory_space<vmem>>, vector<1x128xf32>,
    %c5_i32 = arith.constant 5 : i32
    %258 = arith.addi %0, %c5_i32 : i32
    %259 = arith.index_cast %258 : i32 to index
    %260 = memref.load %arg1[%259] : memref<8xi32, #tpu.memory_space<smem>>
    %c0_104 = arith.constant 0 : index
    %c5 = arith.constant 5 : index
    %c0_105 = arith.constant 0 : index
    %261 = vector.load %arg3[%c0_104, %c5, %c0_105] : memref<4x8x128xi32, #tpu.memory_space<vmem>>, vector<1x1x128xi32>
    %262 = vector.shape_cast %261 : vector<1x1x128xi32> to vector<1x128xi32>
    %c1_106 = arith.constant 1 : index
    %c5_107 = arith.constant 5 : index
    %c0_108 = arith.constant 0 : index
    %263 = vector.load %arg3[%c1_106, %c5_107, %c0_108] : memref<4x8x128xi32, #tpu.memory_space<vmem>>, vector<1x1x128xi32>
    %264 = vector.shape_cast %263 : vector<1x1x128xi32> to vector<1x128xi32>
    %c2_109 = arith.constant 2 : index
    %c5_110 = arith.constant 5 : index
    %c0_111 = arith.constant 0 : index
    %265 = vector.load %arg3[%c2_109, %c5_110, %c0_111] : memref<4x8x128xi32, #tpu.memory_space<vmem>>, vector<1x1x128xi32>
    %266 = vector.shape_cast %265 : vector<1x1x128xi32> to vector<1x128xi32>
    %c3_112 = arith.constant 3 : index
    %c5_113 = arith.constant 5 : index
    %c0_114 = arith.constant 0 : index
    %267 = vector.load %arg3[%c3_112, %c5_113, %c0_114] : memref<4x8x128xi32, #tpu.memory_space<vmem>>, vector<1x1x128xi32>
    %268 = vector.shape_cast %267 : vector<1x1x128xi32> to vector<1x128xi32>
    %269 = vector.shape_cast %262 : vector<1x128xi32> to vector<1x1x128xi32>
    %270 = vector.broadcast %269 : vector<1x1x128xi32> to vector<16x1x128xi32>
    %271 = arith.cmpi sge, %1, %270 : vector<16x1x128xi32>
    %272 = vector.shape_cast %264 : vector<1x128xi32> to vector<1x1x128xi32>
    %273 = vector.broadcast %272 : vector<1x1x128xi32> to vector<16x1x128xi32>
    %274 = arith.cmpi slt, %1, %273 : vector<16x1x128xi32>
    %275 = arith.andi %271, %274 : vector<16x1x128xi1>
    %276 = arith.extui %275 : vector<16x1x128xi1> to vector<16x1x128xi32>
    %277 = arith.sitofp %276 : vector<16x1x128xi32> to vector<16x1x128xf32>
    %278 = vector.broadcast %266 : vector<1x128xi32> to vector<16x128xi32>
    %279 = arith.cmpi sge, %2, %278 : vector<16x128xi32>
    %280 = vector.broadcast %268 : vector<1x128xi32> to vector<16x128xi32>
    %281 = arith.cmpi slt, %2, %280 : vector<16x128xi32>
    %282 = arith.andi %279, %281 : vector<16x128xi1>
    %283 = arith.extui %282 : vector<16x128xi1> to vector<16x128xi32>
    %284 = arith.sitofp %283 : vector<16x128xi32> to vector<16x128xf32>
    %285 = arith.index_cast %260 : i32 to index
    %c0_115 = arith.constant 0 : index
    %c0_116 = arith.constant 0 : index
    %c0_117 = arith.constant 0 : index
    %286 = vector.load %arg2[%285, %c0_115, %c0_116, %c0_117] : memref<2x16x16x128xf32, #tpu.memory_space<vmem>>, vector<1x16x16x128xf32>
    %287 = vector.shape_cast %286 : vector<1x16x16x128xf32> to vector<16x16x128xf32>
    %288 = vector.broadcast %277 : vector<16x1x128xf32> to vector<16x16x128xf32>
    %289 = arith.mulf %287, %288 : vector<16x16x128xf32>
    %cst_118 = arith.constant dense<0.000000e+00> : vector<16x128xf32>
    %290 = vector.multi_reduction <add>, %289, %cst_118 [0] : vector<16x16x128xf32> to vector<16x128xf32>
    %291 = arith.mulf %290, %284 : vector<16x128xf32>
    %cst_119 = arith.constant dense<0.000000e+00> : vector<128xf32>
    %292 = vector.multi_reduction <add>, %291, %cst_119 [0] : vector<16x128xf32> to vector<128xf32>
    %293 = vector.shape_cast %292 : vector<128xf32> to vector<1x128xf32>
    %294 = arith.subi %264, %262 : vector<1x128xi32>
    %295 = arith.subi %268, %266 : vector<1x128xi32>
    %296 = arith.muli %294, %295 : vector<1x128xi32>
    %297 = arith.sitofp %296 : vector<1x128xi32> to vector<1x128xf32>
    %298 = arith.cmpi sle, %264, %262 : vector<1x128xi32>
    %299 = arith.cmpi sle, %268, %266 : vector<1x128xi32>
    %300 = arith.ori %298, %299 : vector<1x128xi1>
    %cst_120 = arith.constant 1.000000e+00 : f32
    %301 = vector.broadcast %cst_120 : f32 to vector<1x128xf32>
    %302 = arith.maximumf %297, %301 : vector<1x128xf32>
    %cst_121 = arith.constant 1.000000e+00 : f32
    %303 = vector.broadcast %cst_121 : f32 to vector<1x128xf32>
    %304 = arith.divf %303, %302 : vector<1x128xf32>
    %cst_122 = arith.constant 0.000000e+00 : f32
    %305 = vector.broadcast %cst_122 : f32 to vector<1x128xf32>
    %306 = arith.select %300, %305, %304 : vector<1x128xi1>, vector<1x128xf32>
    %307 = arith.mulf %293, %306 : vector<1x128xf32>
    %c5_123 = arith.constant 5 : index
    %c0_124 = arith.constant 0 : index
    %308 = vector.load %arg4[%c5_123, %c0_124] : memref<8x128xf32, #tpu.memory_space<vmem>>, vector<1x128xf32>
    tpu.vector_store %arg4[%c5_123, %c0_124], %307 {strides = array<i32>} : memref<8x128xf32, #tpu.memory_space<vmem>>, vector<1x128xf32>,
    %c6_i32 = arith.constant 6 : i32
    %309 = arith.addi %0, %c6_i32 : i32
    %310 = arith.index_cast %309 : i32 to index
    %311 = memref.load %arg1[%310] : memref<8xi32, #tpu.memory_space<smem>>
    %c0_125 = arith.constant 0 : index
    %c6 = arith.constant 6 : index
    %c0_126 = arith.constant 0 : index
    %312 = vector.load %arg3[%c0_125, %c6, %c0_126] : memref<4x8x128xi32, #tpu.memory_space<vmem>>, vector<1x1x128xi32>
    %313 = vector.shape_cast %312 : vector<1x1x128xi32> to vector<1x128xi32>
    %c1_127 = arith.constant 1 : index
    %c6_128 = arith.constant 6 : index
    %c0_129 = arith.constant 0 : index
    %314 = vector.load %arg3[%c1_127, %c6_128, %c0_129] : memref<4x8x128xi32, #tpu.memory_space<vmem>>, vector<1x1x128xi32>
    %315 = vector.shape_cast %314 : vector<1x1x128xi32> to vector<1x128xi32>
    %c2_130 = arith.constant 2 : index
    %c6_131 = arith.constant 6 : index
    %c0_132 = arith.constant 0 : index
    %316 = vector.load %arg3[%c2_130, %c6_131, %c0_132] : memref<4x8x128xi32, #tpu.memory_space<vmem>>, vector<1x1x128xi32>
    %317 = vector.shape_cast %316 : vector<1x1x128xi32> to vector<1x128xi32>
    %c3_133 = arith.constant 3 : index
    %c6_134 = arith.constant 6 : index
    %c0_135 = arith.constant 0 : index
    %318 = vector.load %arg3[%c3_133, %c6_134, %c0_135] : memref<4x8x128xi32, #tpu.memory_space<vmem>>, vector<1x1x128xi32>
    %319 = vector.shape_cast %318 : vector<1x1x128xi32> to vector<1x128xi32>
    %320 = vector.shape_cast %313 : vector<1x128xi32> to vector<1x1x128xi32>
    %321 = vector.broadcast %320 : vector<1x1x128xi32> to vector<16x1x128xi32>
    %322 = arith.cmpi sge, %1, %321 : vector<16x1x128xi32>
    %323 = vector.shape_cast %315 : vector<1x128xi32> to vector<1x1x128xi32>
    %324 = vector.broadcast %323 : vector<1x1x128xi32> to vector<16x1x128xi32>
    %325 = arith.cmpi slt, %1, %324 : vector<16x1x128xi32>
    %326 = arith.andi %322, %325 : vector<16x1x128xi1>
    %327 = arith.extui %326 : vector<16x1x128xi1> to vector<16x1x128xi32>
    %328 = arith.sitofp %327 : vector<16x1x128xi32> to vector<16x1x128xf32>
    %329 = vector.broadcast %317 : vector<1x128xi32> to vector<16x128xi32>
    %330 = arith.cmpi sge, %2, %329 : vector<16x128xi32>
    %331 = vector.broadcast %319 : vector<1x128xi32> to vector<16x128xi32>
    %332 = arith.cmpi slt, %2, %331 : vector<16x128xi32>
    %333 = arith.andi %330, %332 : vector<16x128xi1>
    %334 = arith.extui %333 : vector<16x128xi1> to vector<16x128xi32>
    %335 = arith.sitofp %334 : vector<16x128xi32> to vector<16x128xf32>
    %336 = arith.index_cast %311 : i32 to index
    %c0_136 = arith.constant 0 : index
    %c0_137 = arith.constant 0 : index
    %c0_138 = arith.constant 0 : index
    %337 = vector.load %arg2[%336, %c0_136, %c0_137, %c0_138] : memref<2x16x16x128xf32, #tpu.memory_space<vmem>>, vector<1x16x16x128xf32>
    %338 = vector.shape_cast %337 : vector<1x16x16x128xf32> to vector<16x16x128xf32>
    %339 = vector.broadcast %328 : vector<16x1x128xf32> to vector<16x16x128xf32>
    %340 = arith.mulf %338, %339 : vector<16x16x128xf32>
    %cst_139 = arith.constant dense<0.000000e+00> : vector<16x128xf32>
    %341 = vector.multi_reduction <add>, %340, %cst_139 [0] : vector<16x16x128xf32> to vector<16x128xf32>
    %342 = arith.mulf %341, %335 : vector<16x128xf32>
    %cst_140 = arith.constant dense<0.000000e+00> : vector<128xf32>
    %343 = vector.multi_reduction <add>, %342, %cst_140 [0] : vector<16x128xf32> to vector<128xf32>
    %344 = vector.shape_cast %343 : vector<128xf32> to vector<1x128xf32>
    %345 = arith.subi %315, %313 : vector<1x128xi32>
    %346 = arith.subi %319, %317 : vector<1x128xi32>
    %347 = arith.muli %345, %346 : vector<1x128xi32>
    %348 = arith.sitofp %347 : vector<1x128xi32> to vector<1x128xf32>
    %349 = arith.cmpi sle, %315, %313 : vector<1x128xi32>
    %350 = arith.cmpi sle, %319, %317 : vector<1x128xi32>
    %351 = arith.ori %349, %350 : vector<1x128xi1>
    %cst_141 = arith.constant 1.000000e+00 : f32
    %352 = vector.broadcast %cst_141 : f32 to vector<1x128xf32>
    %353 = arith.maximumf %348, %352 : vector<1x128xf32>
    %cst_142 = arith.constant 1.000000e+00 : f32
    %354 = vector.broadcast %cst_142 : f32 to vector<1x128xf32>
    %355 = arith.divf %354, %353 : vector<1x128xf32>
    %cst_143 = arith.constant 0.000000e+00 : f32
    %356 = vector.broadcast %cst_143 : f32 to vector<1x128xf32>
    %357 = arith.select %351, %356, %355 : vector<1x128xi1>, vector<1x128xf32>
    %358 = arith.mulf %344, %357 : vector<1x128xf32>
    %c6_144 = arith.constant 6 : index
    %c0_145 = arith.constant 0 : index
    %359 = vector.load %arg4[%c6_144, %c0_145] : memref<8x128xf32, #tpu.memory_space<vmem>>, vector<1x128xf32>
    tpu.vector_store %arg4[%c6_144, %c0_145], %358 {strides = array<i32>} : memref<8x128xf32, #tpu.memory_space<vmem>>, vector<1x128xf32>,
    %c7_i32 = arith.constant 7 : i32
    %360 = arith.addi %0, %c7_i32 : i32
    %361 = arith.index_cast %360 : i32 to index
    %362 = memref.load %arg1[%361] : memref<8xi32, #tpu.memory_space<smem>>
    %c0_146 = arith.constant 0 : index
    %c7 = arith.constant 7 : index
    %c0_147 = arith.constant 0 : index
    %363 = vector.load %arg3[%c0_146, %c7, %c0_147] : memref<4x8x128xi32, #tpu.memory_space<vmem>>, vector<1x1x128xi32>
    %364 = vector.shape_cast %363 : vector<1x1x128xi32> to vector<1x128xi32>
    %c1_148 = arith.constant 1 : index
    %c7_149 = arith.constant 7 : index
    %c0_150 = arith.constant 0 : index
    %365 = vector.load %arg3[%c1_148, %c7_149, %c0_150] : memref<4x8x128xi32, #tpu.memory_space<vmem>>, vector<1x1x128xi32>
    %366 = vector.shape_cast %365 : vector<1x1x128xi32> to vector<1x128xi32>
    %c2_151 = arith.constant 2 : index
    %c7_152 = arith.constant 7 : index
    %c0_153 = arith.constant 0 : index
    %367 = vector.load %arg3[%c2_151, %c7_152, %c0_153] : memref<4x8x128xi32, #tpu.memory_space<vmem>>, vector<1x1x128xi32>
    %368 = vector.shape_cast %367 : vector<1x1x128xi32> to vector<1x128xi32>
    %c3_154 = arith.constant 3 : index
    %c7_155 = arith.constant 7 : index
    %c0_156 = arith.constant 0 : index
    %369 = vector.load %arg3[%c3_154, %c7_155, %c0_156] : memref<4x8x128xi32, #tpu.memory_space<vmem>>, vector<1x1x128xi32>
    %370 = vector.shape_cast %369 : vector<1x1x128xi32> to vector<1x128xi32>
    %371 = vector.shape_cast %364 : vector<1x128xi32> to vector<1x1x128xi32>
    %372 = vector.broadcast %371 : vector<1x1x128xi32> to vector<16x1x128xi32>
    %373 = arith.cmpi sge, %1, %372 : vector<16x1x128xi32>
    %374 = vector.shape_cast %366 : vector<1x128xi32> to vector<1x1x128xi32>
    %375 = vector.broadcast %374 : vector<1x1x128xi32> to vector<16x1x128xi32>
    %376 = arith.cmpi slt, %1, %375 : vector<16x1x128xi32>
    %377 = arith.andi %373, %376 : vector<16x1x128xi1>
    %378 = arith.extui %377 : vector<16x1x128xi1> to vector<16x1x128xi32>
    %379 = arith.sitofp %378 : vector<16x1x128xi32> to vector<16x1x128xf32>
    %380 = vector.broadcast %368 : vector<1x128xi32> to vector<16x128xi32>
    %381 = arith.cmpi sge, %2, %380 : vector<16x128xi32>
    %382 = vector.broadcast %370 : vector<1x128xi32> to vector<16x128xi32>
    %383 = arith.cmpi slt, %2, %382 : vector<16x128xi32>
    %384 = arith.andi %381, %383 : vector<16x128xi1>
    %385 = arith.extui %384 : vector<16x128xi1> to vector<16x128xi32>
    %386 = arith.sitofp %385 : vector<16x128xi32> to vector<16x128xf32>
    %387 = arith.index_cast %362 : i32 to index
    %c0_157 = arith.constant 0 : index
    %c0_158 = arith.constant 0 : index
    %c0_159 = arith.constant 0 : index
    %388 = vector.load %arg2[%387, %c0_157, %c0_158, %c0_159] : memref<2x16x16x128xf32, #tpu.memory_space<vmem>>, vector<1x16x16x128xf32>
    %389 = vector.shape_cast %388 : vector<1x16x16x128xf32> to vector<16x16x128xf32>
    %390 = vector.broadcast %379 : vector<16x1x128xf32> to vector<16x16x128xf32>
    %391 = arith.mulf %389, %390 : vector<16x16x128xf32>
    %cst_160 = arith.constant dense<0.000000e+00> : vector<16x128xf32>
    %392 = vector.multi_reduction <add>, %391, %cst_160 [0] : vector<16x16x128xf32> to vector<16x128xf32>
    %393 = arith.mulf %392, %386 : vector<16x128xf32>
    %cst_161 = arith.constant dense<0.000000e+00> : vector<128xf32>
    %394 = vector.multi_reduction <add>, %393, %cst_161 [0] : vector<16x128xf32> to vector<128xf32>
    %395 = vector.shape_cast %394 : vector<128xf32> to vector<1x128xf32>
    %396 = arith.subi %366, %364 : vector<1x128xi32>
    %397 = arith.subi %370, %368 : vector<1x128xi32>
    %398 = arith.muli %396, %397 : vector<1x128xi32>
    %399 = arith.sitofp %398 : vector<1x128xi32> to vector<1x128xf32>
    %400 = arith.cmpi sle, %366, %364 : vector<1x128xi32>
    %401 = arith.cmpi sle, %370, %368 : vector<1x128xi32>
    %402 = arith.ori %400, %401 : vector<1x128xi1>
    %cst_162 = arith.constant 1.000000e+00 : f32
    %403 = vector.broadcast %cst_162 : f32 to vector<1x128xf32>
    %404 = arith.maximumf %399, %403 : vector<1x128xf32>
    %cst_163 = arith.constant 1.000000e+00 : f32
    %405 = vector.broadcast %cst_163 : f32 to vector<1x128xf32>
    %406 = arith.divf %405, %404 : vector<1x128xf32>
    %cst_164 = arith.constant 0.000000e+00 : f32
    %407 = vector.broadcast %cst_164 : f32 to vector<1x128xf32>
    %408 = arith.select %402, %407, %406 : vector<1x128xi1>, vector<1x128xf32>
    %409 = arith.mulf %395, %408 : vector<1x128xf32>
    %c7_165 = arith.constant 7 : index
    %c0_166 = arith.constant 0 : index
    %410 = vector.load %arg4[%c7_165, %c0_166] : memref<8x128xf32, #tpu.memory_space<vmem>>, vector<1x128xf32>
    tpu.vector_store %arg4[%c7_165, %c0_166], %409 {strides = array<i32>} : memref<8x128xf32, #tpu.memory_space<vmem>>, vector<1x128xf32>,
    return
  }
  func.func @transform_0(%arg0: i32, %arg1: memref<8xi32, #tpu.memory_space<smem>>) -> (i32, i32, i32, i32) {
    %c0_i32 = arith.constant 0 : i32
    %c0_i32_0 = arith.constant 0 : i32
    %c0_i32_1 = arith.constant 0 : i32
    %c0_i32_2 = arith.constant 0 : i32
    %c0_i32_3 = arith.constant 0 : i32
    return %c0_i32, %c0_i32_0, %c0_i32_1, %c0_i32_2 : i32, i32, i32, i32
  }
  func.func @transform_1(%arg0: i32, %arg1: memref<8xi32, #tpu.memory_space<smem>>) -> (i32, i32, i32) {
    %c0_i32 = arith.constant 0 : i32
    %c0_i32_0 = arith.constant 0 : i32
    %c0_i32_1 = arith.constant 0 : i32
    return %c0_i32, %arg0, %c0_i32_0 : i32, i32, i32
  }
  func.func @transform_2(%arg0: i32, %arg1: memref<8xi32, #tpu.memory_space<smem>>) -> (i32, i32) {
    %c0_i32 = arith.constant 0 : i32
    %c0_i32_0 = arith.constant 0 : i32
    return %arg0, %c0_i32 : i32, i32
  }
}

</mosaic_0001>

<llo_original>
// kernel: tpu_custom_call.1
$region0: #{tpu_custom_call.1}
  #allocation0 [shape = 'u32[]', space=smem, size = 0x4, offset = 0x4, fixed_abs, tag = 'smem constant byte address 0x4 - core index']
  #allocation1 [shape = 'u32[144,128]{1,0:T(1,128)}', space=vmem, size = 0x12000, scoped, tag = 'internal scratch']
  #allocation2 [shape = 's32[1]{0}', space=sflag, size = 0x4, scoped, tag = 'scoped memory for tpu_custom_call.1']
  #allocation3 [shape = 'u8[512]{0}', space=smem, size = 0x200, scoped, tag = 'prefetched SMEM operand 0']
  %s0 = inlined_call_operand.hbm [shape: s32[8], index: 0, kind: input, shape index: {}]
  %s1 = inlined_call_operand.hbm [shape: f32[2,16,16,128], index: 1, kind: input, shape index: {}]
  %s2 = inlined_call_operand.hbm [shape: s32[4,8,128], index: 2, kind: input, shape index: {}]
  %s3 = inlined_call_operand.hbm [shape: f32[8,128], index: 3, kind: output, shape index: {}]
  %s4 = sld [smem:[#allocation0]]
  $region26: #{tpu_custom_call.1} parent=0
    _
  %s6 = ssub.s32 1, %s4
  %s7 = scalar_select 0, %s6, %s4
  %9 = dma.hbm_to_smem %s0, 16, [#allocation3], [#allocation2]
  %10 = dma.done [#allocation2], 16
  %11 = sfence
  $region1: #{tpu_custom_call.1} parent=0
    #allocation4 [shape = 'u8[262144]{0}', space=vmem, size = 0x40000, scoped, tag = 'input window, operand 1, single buffered']
    #allocation5 [shape = 's32[1]{0}', space=sflag, size = 0x4, scoped, tag = 'scoped memory for tpu_custom_call.1']
    #allocation6 [shape = 's32[1]{0}', space=sflag, size = 0x4, scoped, tag = 'scoped memory for tpu_custom_call.1']
    #allocation7 [shape = 'u8[16384]{0}', space=vmem, size = 0x4000, scoped, tag = 'input window, operand 2, single buffered']
    #allocation8 [shape = 's32[1]{0}', space=sflag, size = 0x4, scoped, tag = 'scoped memory for tpu_custom_call.1']
    #allocation9 [shape = 'u8[4096]{0}', space=vmem, size = 0x1000, scoped, tag = 'output window, operand 0, single buffered']
    %12 = vsyncpa [#allocation5], 0
    %13 = vsyncpa [#allocation8], 0
    %14 = vsyncpa [#allocation6], 0
    // Predicated region
    $region2: #{tpu_custom_call.1} parent=1 // pred_check
      _
    $region3: #{tpu_custom_call.1} parent=1 // pred_check_branch
      %16 = sbr.rel (0) target = $region5
    $region4: #{tpu_custom_call.1} parent=1 // pred_region
      %s18 = ssub.s32 8192, 8192
      %19 = vsyncadd [#allocation5], %s18
      %s20 = sshll.u32 [#allocation4], 4
      %s21 = int_to_ptr.vmem [resolvable:$true] %s20
      %26 = dma.hbm_to_vmem [thread:$0]  %s1, 8192, %s21, [#allocation5], 128, 128, 8
    $region5: #{tpu_custom_call.1} parent=1 // pred_fallthru
      _
    // Predicated region
    $region6: #{tpu_custom_call.1} parent=1 // pred_check
      _
    $region7: #{tpu_custom_call.1} parent=1 // pred_check_branch
      %28 = sbr.rel (0) target = $region9
    $region8: #{tpu_custom_call.1} parent=1 // pred_region
      %s30 = ssub.s32 512, 512
      %31 = vsyncadd [#allocation8], %s30
      %s32 = sshll.u32 [#allocation7], 4
      %s33 = int_to_ptr.vmem [resolvable:$true] %s32
      %38 = dma.hbm_to_vmem [thread:$0]  %s2, 512, %s33, [#allocation8], 128, 128, 8
    $region9: #{tpu_custom_call.1} parent=1 // pred_fallthru
      _
    // Predicated region
    $region10: #{tpu_custom_call.1} parent=1 // pred_check
      _
    $region11: #{tpu_custom_call.1} parent=1 // pred_check_branch
      %40 = sbr.rel (0) target = $region13
    $region12: #{tpu_custom_call.1} parent=1 // pred_region
      %41 = dma.done [#allocation5], 8192
    $region13: #{tpu_custom_call.1} parent=1 // pred_fallthru
      _
    // Predicated region
    $region14: #{tpu_custom_call.1} parent=1 // pred_check
      _
    $region15: #{tpu_custom_call.1} parent=1 // pred_check_branch
      %43 = sbr.rel (0) target = $region17
    $region16: #{tpu_custom_call.1} parent=1 // pred_region
      %44 = dma.done [#allocation8], 512
    $region17: #{tpu_custom_call.1} parent=1 // pred_fallthru
      _
    %s45 = smul.u32 0, 8
    %v46 = vlaneseq
    %v47 = vshrl.u32 %v46, 7
    %v48 = vadd.s32 %v47, 8
    %s49 = sld [smem:[#allocation3 + %s45]]
    %v50 = vld [vmem:[#allocation7] sm:$0x1]
    %s51 = scalar_lea.vmem [#allocation7], 8
    %v52 = vld [vmem:[%s51] sm:$0x1]
    %s53 = scalar_lea.vmem [#allocation7], 16
    %v54 = vld [vmem:[%s53] sm:$0x1]
    %s55 = scalar_lea.vmem [#allocation7], 24
    %v56 = vld [vmem:[%s55] sm:$0x1]
    %vm57 = vcmp.le.s32.totalorder %v50, 0
    %vm58 = vcmp.le.s32.totalorder %v50, 1
    %vm59 = vcmp.le.s32.totalorder %v50, 2
    %vm60 = vcmp.le.s32.totalorder %v50, 3
    %vm61 = vcmp.le.s32.totalorder %v50, 4
    %vm62 = vcmp.le.s32.totalorder %v50, 5
    %vm63 = vcmp.le.s32.totalorder %v50, 6
    %vm64 = vcmp.le.s32.totalorder %v50, 7
    %vm65 = vcmp.le.s32.totalorder %v50, 8
    %vm66 = vcmp.le.s32.totalorder %v50, 9
    %vm67 = vcmp.le.s32.totalorder %v50, 10
    %vm68 = vcmp.le.s32.totalorder %v50, 11
    %vm69 = vcmp.le.s32.totalorder %v50, 12
    %vm70 = vcmp.le.s32.totalorder %v50, 13
    %vm71 = vcmp.le.s32.totalorder %v50, 14
    %vm72 = vcmp.le.s32.totalorder %v50, 15
    %vm73 = vcmp.gt.s32.totalorder %v52, 0
    %vm74 = vcmp.gt.s32.totalorder %v52, 1
    %vm75 = vcmp.gt.s32.totalorder %v52, 2
    %vm76 = vcmp.gt.s32.totalorder %v52, 3
    %vm77 = vcmp.gt.s32.totalorder %v52, 4
    %vm78 = vcmp.gt.s32.totalorder %v52, 5
    %vm79 = vcmp.gt.s32.totalorder %v52, 6
    %vm80 = vcmp.gt.s32.totalorder %v52, 7
    %vm81 = vcmp.gt.s32.totalorder %v52, 8
    %vm82 = vcmp.gt.s32.totalorder %v52, 9
    %vm83 = vcmp.gt.s32.totalorder %v52, 10
    %vm84 = vcmp.gt.s32.totalorder %v52, 11
    %vm85 = vcmp.gt.s32.totalorder %v52, 12
    %vm86 = vcmp.gt.s32.totalorder %v52, 13
    %vm87 = vcmp.gt.s32.totalorder %v52, 14
    %vm88 = vcmp.gt.s32.totalorder %v52, 15
    %vm89 = vmand %vm57, %vm73
    %vm90 = vmand %vm58, %vm74
    %vm91 = vmand %vm59, %vm75
    %vm92 = vmand %vm60, %vm76
    %vm93 = vmand %vm61, %vm77
    %vm94 = vmand %vm62, %vm78
    %vm95 = vmand %vm63, %vm79
    %vm96 = vmand %vm64, %vm80
    %vm97 = vmand %vm65, %vm81
    %vm98 = vmand %vm66, %vm82
    %vm99 = vmand %vm67, %vm83
    %vm100 = vmand %vm68, %vm84
    %vm101 = vmand %vm69, %vm85
    %vm102 = vmand %vm70, %vm86
    %vm103 = vmand %vm71, %vm87
    %vm104 = vmand %vm72, %vm88
    %v105 = vsel %vm89, 1, 0
    %v106 = vsel %vm90, 1, 0
    %v107 = vsel %vm91, 1, 0
    %v108 = vsel %vm92, 1, 0
    %v109 = vsel %vm93, 1, 0
    %v110 = vsel %vm94, 1, 0
    %v111 = vsel %vm95, 1, 0
    %v112 = vsel %vm96, 1, 0
    %v113 = vsel %vm97, 1, 0
    %v114 = vsel %vm98, 1, 0
    %v115 = vsel %vm99, 1, 0
    %v116 = vsel %vm100, 1, 0
    %v117 = vsel %vm101, 1, 0
    %v118 = vsel %vm102, 1, 0
    %v119 = vsel %vm103, 1, 0
    %v120 = vsel %vm104, 1, 0
    %v121 = vcvt.s32.f32 %v105
    %v122 = vcvt.s32.f32 %v106
    %v123 = vcvt.s32.f32 %v107
    %v124 = vcvt.s32.f32 %v108
    %v125 = vcvt.s32.f32 %v109
    %v126 = vcvt.s32.f32 %v110
    %v127 = vcvt.s32.f32 %v111
    %v128 = vcvt.s32.f32 %v112
    %v129 = vcvt.s32.f32 %v113
    %v130 = vcvt.s32.f32 %v114
    %v131 = vcvt.s32.f32 %v115
    %v132 = vcvt.s32.f32 %v116
    %v133 = vcvt.s32.f32 %v117
    %v134 = vcvt.s32.f32 %v118
    %v135 = vcvt.s32.f32 %v119
    %v136 = vcvt.s32.f32 %v120
    %v137 = vlaneseq
    %v138 = vshrl.u32 %v137, 7
    %v139 = vsub.s32 0, %v138
    %v140 = vrot.slane %v54, %v139
    %vm141 = vcmp.ge.s32.totalorder %v47, %v140
    %vm142 = vcmp.ge.s32.totalorder %v48, %v140
    %v143 = vlaneseq
    %v144 = vshrl.u32 %v143, 7
    %v145 = vsub.s32 0, %v144
    %v146 = vrot.slane %v56, %v145
    %vm147 = vcmp.lt.s32.totalorder %v47, %v146
    %vm148 = vcmp.lt.s32.totalorder %v48, %v146
    %vm149 = vmand %vm141, %vm147
    %vm150 = vmand %vm142, %vm148
    %v151 = vsel %vm149, 1, 0
    %v152 = vsel %vm150, 1, 0
    %v153 = vcvt.s32.f32 %v151
    %v154 = vcvt.s32.f32 %v152
    %s155 = smul.u32 %s49, 256
    %s156 = scalar_lea.vmem [#allocation4], %s155
    %v157 = vld [vmem:[%s156] sm:$0xff]
    %v158 = vld [vmem:[%s156 + $0x8] sm:$0xff]
    %v159 = vld [vmem:[%s156 + $0x10] sm:$0xff]
    %v160 = vld [vmem:[%s156 + $0x18] sm:$0xff]
    %v161 = vld [vmem:[%s156 + $0x20] sm:$0xff]
    %v162 = vld [vmem:[%s156 + $0x28] sm:$0xff]
    %v163 = vld [vmem:[%s156 + $0x30] sm:$0xff]
    %v164 = vld [vmem:[%s156 + $0x38] sm:$0xff]
    %v165 = vld [vmem:[%s156 + $0x40] sm:$0xff]
    %v166 = vld [vmem:[%s156 + $0x48] sm:$0xff]
    %v167 = vld [vmem:[%s156 + $0x50] sm:$0xff]
    %v168 = vld [vmem:[%s156 + $0x58] sm:$0xff]
    %v169 = vld [vmem:[%s156 + $0x60] sm:$0xff]
    %v170 = vld [vmem:[%s156 + $0x68] sm:$0xff]
    %v171 = vld [vmem:[%s156 + $0x70] sm:$0xff]
    %v172 = vld [vmem:[%s156 + $0x78] sm:$0xff]
    %v173 = vld [vmem:[%s156 + $0x80] sm:$0xff]
    %v174 = vld [vmem:[%s156 + $0x88] sm:$0xff]
    %v175 = vld [vmem:[%s156 + $0x90] sm:$0xff]
    %v176 = vld [vmem:[%s156 + $0x98] sm:$0xff]
    %v177 = vld [vmem:[%s156 + $0xa0] sm:$0xff]
    %v178 = vld [vmem:[%s156 + $0xa8] sm:$0xff]
    %v179 = vld [vmem:[%s156 + $0xb0] sm:$0xff]
    %v180 = vld [vmem:[%s156 + $0xb8] sm:$0xff]
    %v181 = vld [vmem:[%s156 + $0xc0] sm:$0xff]
    %v182 = vld [vmem:[%s156 + $0xc8] sm:$0xff]
    %v183 = vld [vmem:[%s156 + $0xd0] sm:$0xff]
    %v184 = vld [vmem:[%s156 + $0xd8] sm:$0xff]
    %v185 = vld [vmem:[%s156 + $0xe0] sm:$0xff]
    %v186 = vld [vmem:[%s156 + $0xe8] sm:$0xff]
    %v187 = vld [vmem:[%s156 + $0xf0] sm:$0xff]
    %v188 = vld [vmem:[%s156 + $0xf8] sm:$0xff]
    %v189 = vlaneseq
    %v190 = vshrl.u32 %v189, 7
    %v191 = vsub.s32 0, %v190
    %v192 = vrot.slane %v121, %v191
    %v193 = vlaneseq
    %v194 = vshrl.u32 %v193, 7
    %v195 = vsub.s32 0, %v194
    %v196 = vrot.slane %v122, %v195
    %v197 = vlaneseq
    %v198 = vshrl.u32 %v197, 7
    %v199 = vsub.s32 0, %v198
    %v200 = vrot.slane %v123, %v199
    %v201 = vlaneseq
    %v202 = vshrl.u32 %v201, 7
    %v203 = vsub.s32 0, %v202
    %v204 = vrot.slane %v124, %v203
    %v205 = vlaneseq
    %v206 = vshrl.u32 %v205, 7
    %v207 = vsub.s32 0, %v206
    %v208 = vrot.slane %v125, %v207
    %v209 = vlaneseq
    %v210 = vshrl.u32 %v209, 7
    %v211 = vsub.s32 0, %v210
    %v212 = vrot.slane %v126, %v211
    %v213 = vlaneseq
    %v214 = vshrl.u32 %v213, 7
    %v215 = vsub.s32 0, %v214
    %v216 = vrot.slane %v127, %v215
    %v217 = vlaneseq
    %v218 = vshrl.u32 %v217, 7
    %v219 = vsub.s32 0, %v218
    %v220 = vrot.slane %v128, %v219
    %v221 = vlaneseq
    %v222 = vshrl.u32 %v221, 7
    %v223 = vsub.s32 0, %v222
    %v224 = vrot.slane %v129, %v223
    %v225 = vlaneseq
    %v226 = vshrl.u32 %v225, 7
    %v227 = vsub.s32 0, %v226
    %v228 = vrot.slane %v130, %v227
    %v229 = vlaneseq
    %v230 = vshrl.u32 %v229, 7
    %v231 = vsub.s32 0, %v230
    %v232 = vrot.slane %v131, %v231
    %v233 = vlaneseq
    %v234 = vshrl.u32 %v233, 7
    %v235 = vsub.s32 0, %v234
    %v236 = vrot.slane %v132, %v235
    %v237 = vlaneseq
    %v238 = vshrl.u32 %v237, 7
    %v239 = vsub.s32 0, %v238
    %v240 = vrot.slane %v133, %v239
    %v241 = vlaneseq
    %v242 = vshrl.u32 %v241, 7
    %v243 = vsub.s32 0, %v242
    %v244 = vrot.slane %v134, %v243
    %v245 = vlaneseq
    %v246 = vshrl.u32 %v245, 7
    %v247 = vsub.s32 0, %v246
    %v248 = vrot.slane %v135, %v247
    %v249 = vlaneseq
    %v250 = vshrl.u32 %v249, 7
    %v251 = vsub.s32 0, %v250
    %v252 = vrot.slane %v136, %v251
    %v253 = vmul.f32 %v157, %v192
    %v254 = vmul.f32 %v158, %v192
    %v255 = vmul.f32 %v159, %v196
    %v256 = vmul.f32 %v160, %v196
    %v257 = vmul.f32 %v161, %v200
    %v258 = vmul.f32 %v162, %v200
    %v259 = vmul.f32 %v163, %v204
    %v260 = vmul.f32 %v164, %v204
    %v261 = vmul.f32 %v165, %v208
    %v262 = vmul.f32 %v166, %v208
    %v263 = vmul.f32 %v167, %v212
    %v264 = vmul.f32 %v168, %v212
    %v265 = vmul.f32 %v169, %v216
    %v266 = vmul.f32 %v170, %v216
    %v267 = vmul.f32 %v171, %v220
    %v268 = vmul.f32 %v172, %v220
    %v269 = vmul.f32 %v173, %v224
    %v270 = vmul.f32 %v174, %v224
    %v271 = vmul.f32 %v175, %v228
    %v272 = vmul.f32 %v176, %v228
    %v273 = vmul.f32 %v177, %v232
    %v274 = vmul.f32 %v178, %v232
    %v275 = vmul.f32 %v179, %v236
    %v276 = vmul.f32 %v180, %v236
    %v277 = vmul.f32 %v181, %v240
    %v278 = vmul.f32 %v182, %v240
    %v279 = vmul.f32 %v183, %v244
    %v280 = vmul.f32 %v184, %v244
    %v281 = vmul.f32 %v185, %v248
    %v282 = vmul.f32 %v186, %v248
    %v283 = vmul.f32 %v187, %v252
    %v284 = vmul.f32 %v188, %v252
    %v285 = vadd.f32 %v253, %v255
    %v286 = vadd.f32 %v285, %v257
    %v287 = vadd.f32 %v286, %v259
    %v288 = vadd.f32 %v287, %v261
    %v289 = vadd.f32 %v288, %v263
    %v290 = vadd.f32 %v289, %v265
    %v291 = vadd.f32 %v290, %v267
    %v292 = vadd.f32 %v291, %v269
    %v293 = vadd.f32 %v292, %v271
    %v294 = vadd.f32 %v293, %v273
    %v295 = vadd.f32 %v294, %v275
    %v296 = vadd.f32 %v295, %v277
    %v297 = vadd.f32 %v296, %v279
    %v298 = vadd.f32 %v297, %v281
    %v299 = vadd.f32 %v298, %v283
    %v300 = vadd.f32 %v254, %v256
    %v301 = vadd.f32 %v300, %v258
    %v302 = vadd.f32 %v301, %v260
    %v303 = vadd.f32 %v302, %v262
    %v304 = vadd.f32 %v303, %v264
    %v305 = vadd.f32 %v304, %v266
    %v306 = vadd.f32 %v305, %v268
    %v307 = vadd.f32 %v306, %v270
    %v308 = vadd.f32 %v307, %v272
    %v309 = vadd.f32 %v308, %v274
    %v310 = vadd.f32 %v309, %v276
    %v311 = vadd.f32 %v310, %v278
    %v312 = vadd.f32 %v311, %v280
    %v313 = vadd.f32 %v312, %v282
    %v314 = vadd.f32 %v313, %v284
    %v315 = vmul.f32 %v299, %v153
    %v316 = vmul.f32 %v314, %v154
    %v317 = vadd.f32 %v315, %v316
    %v318 = vrot.slane %v317, 4
    %v319 = vadd.f32 %v317, %v318
    %v320 = vrot.slane %v319, 2
    %v321 = vadd.f32 %v319, %v320
    %v322 = vrot.slane %v321, 1
    %v323 = vadd.f32 %v321, %v322
    %v324 = vsub.s32 %v52, %v50
    %v325 = vsub.s32 %v56, %v54
    %v326 = vmul.u32 %v324, %v325
    %v327 = vcvt.s32.f32 %v326
    %vm328 = vcmp.le.s32.totalorder %v52, %v50
    %vm329 = vcmp.le.s32.totalorder %v56, %v54
    %vm330 = vmor %vm328, %vm329
    %v331 = vmax.f32 %v327, 1.0
    %v332 = vrcp.pop %v331
    %v333 = vmul.f32 1.0, %v332
    %v334 = vsel %vm330, 0.0, %v333
    %v335 = vmul.f32 %v323, %v334
    %336 = vst [vmem:[#allocation9] sm:$0x1] %v335
    %s337 = sadd.s32 %s45, 1
    %s338 = sld [smem:[#allocation3 + %s337]]
    %v339 = vld [vmem:[#allocation7 + $0x1] sm:$0x1]
    %v340 = vld [vmem:[%s51 + $0x1] sm:$0x1]
    %v341 = vld [vmem:[%s53 + $0x1] sm:$0x1]
    %v342 = vld [vmem:[%s55 + $0x1] sm:$0x1]
    %vm343 = vcmp.le.s32.totalorder %v339, 0
    %vm344 = vcmp.le.s32.totalorder %v339, 1
    %vm345 = vcmp.le.s32.totalorder %v339, 2
    %vm346 = vcmp.le.s32.totalorder %v339, 3
    %vm347 = vcmp.le.s32.totalorder %v339, 4
    %vm348 = vcmp.le.s32.totalorder %v339, 5
    %vm349 = vcmp.le.s32.totalorder %v339, 6
    %vm350 = vcmp.le.s32.totalorder %v339, 7
    %vm351 = vcmp.le.s32.totalorder %v339, 8
    %vm352 = vcmp.le.s32.totalorder %v339, 9
    %vm353 = vcmp.le.s32.totalorder %v339, 10
    %vm354 = vcmp.le.s32.totalorder %v339, 11
    %vm355 = vcmp.le.s32.totalorder %v339, 12
    %vm356 = vcmp.le.s32.totalorder %v339, 13
    %vm357 = vcmp.le.s32.totalorder %v339, 14
    %vm358 = vcmp.le.s32.totalorder %v339, 15
    %vm359 = vcmp.gt.s32.totalorder %v340, 0
    %vm360 = vcmp.gt.s32.totalorder %v340, 1
    %vm361 = vcmp.gt.s32.totalorder %v340, 2
    %vm362 = vcmp.gt.s32.totalorder %v340, 3
    %vm363 = vcmp.gt.s32.totalorder %v340, 4
    %vm364 = vcmp.gt.s32.totalorder %v340, 5
    %vm365 = vcmp.gt.s32.totalorder %v340, 6
    %vm366 = vcmp.gt.s32.totalorder %v340, 7
    %vm367 = vcmp.gt.s32.totalorder %v340, 8
    %vm368 = vcmp.gt.s32.totalorder %v340, 9
    %vm369 = vcmp.gt.s32.totalorder %v340, 10
    %vm370 = vcmp.gt.s32.totalorder %v340, 11
    %vm371 = vcmp.gt.s32.totalorder %v340, 12
    %vm372 = vcmp.gt.s32.totalorder %v340, 13
    %vm373 = vcmp.gt.s32.totalorder %v340, 14
    %vm374 = vcmp.gt.s32.totalorder %v340, 15
    %vm375 = vmand %vm343, %vm359
    %vm376 = vmand %vm344, %vm360
    %vm377 = vmand %vm345, %vm361
    %vm378 = vmand %vm346, %vm362
    %vm379 = vmand %vm347, %vm363
    %vm380 = vmand %vm348, %vm364
    %vm381 = vmand %vm349, %vm365
    %vm382 = vmand %vm350, %vm366
    %vm383 = vmand %vm351, %vm367
    %vm384 = vmand %vm352, %vm368
    %vm385 = vmand %vm353, %vm369
    %vm386 = vmand %vm354, %vm370
    %vm387 = vmand %vm355, %vm371
    %vm388 = vmand %vm356, %vm372
    %vm389 = vmand %vm357, %vm373
    %vm390 = vmand %vm358, %vm374
    %v391 = vsel %vm375, 1, 0
    %v392 = vsel %vm376, 1, 0
    %v393 = vsel %vm377, 1, 0
    %v394 = vsel %vm378, 1, 0
    %v395 = vsel %vm379, 1, 0
    %v396 = vsel %vm380, 1, 0
    %v397 = vsel %vm381, 1, 0
    %v398 = vsel %vm382, 1, 0
    %v399 = vsel %vm383, 1, 0
    %v400 = vsel %vm384, 1, 0
    %v401 = vsel %vm385, 1, 0
    %v402 = vsel %vm386, 1, 0
    %v403 = vsel %vm387, 1, 0
    %v404 = vsel %vm388, 1, 0
    %v405 = vsel %vm389, 1, 0
    %v406 = vsel %vm390, 1, 0
    %v407 = vcvt.s32.f32 %v391
    %v408 = vcvt.s32.f32 %v392
    %v409 = vcvt.s32.f32 %v393
    %v410 = vcvt.s32.f32 %v394
    %v411 = vcvt.s32.f32 %v395
    %v412 = vcvt.s32.f32 %v396
    %v413 = vcvt.s32.f32 %v397
    %v414 = vcvt.s32.f32 %v398
    %v415 = vcvt.s32.f32 %v399
    %v416 = vcvt.s32.f32 %v400
    %v417 = vcvt.s32.f32 %v401
    %v418 = vcvt.s32.f32 %v402
    %v419 = vcvt.s32.f32 %v403
    %v420 = vcvt.s32.f32 %v404
    %v421 = vcvt.s32.f32 %v405
    %v422 = vcvt.s32.f32 %v406
    %v423 = vlaneseq
    %v424 = vshrl.u32 %v423, 7
    %v425 = vsub.s32 0, %v424
    %v426 = vrot.slane %v341, %v425
    %vm427 = vcmp.ge.s32.totalorder %v47, %v426
    %vm428 = vcmp.ge.s32.totalorder %v48, %v426
    %v429 = vlaneseq
    %v430 = vshrl.u32 %v429, 7
    %v431 = vsub.s32 0, %v430
    %v432 = vrot.slane %v342, %v431
    %vm433 = vcmp.lt.s32.totalorder %v47, %v432
    %vm434 = vcmp.lt.s32.totalorder %v48, %v432
    %vm435 = vmand %vm427, %vm433
    %vm436 = vmand %vm428, %vm434
    %v437 = vsel %vm435, 1, 0
    %v438 = vsel %vm436, 1, 0
    %v439 = vcvt.s32.f32 %v437
    %v440 = vcvt.s32.f32 %v438
    %s441 = smul.u32 %s338, 256
    %s442 = scalar_lea.vmem [#allocation4], %s441
    %v443 = vld [vmem:[%s442] sm:$0xff]
    %v444 = vld [vmem:[%s442 + $0x8] sm:$0xff]
    %v445 = vld [vmem:[%s442 + $0x10] sm:$0xff]
    %v446 = vld [vmem:[%s442 + $0x18] sm:$0xff]
    %v447 = vld [vmem:[%s442 + $0x20] sm:$0xff]
    %v448 = vld [vmem:[%s442 + $0x28] sm:$0xff]
    %v449 = vld [vmem:[%s442 + $0x30] sm:$0xff]
    %v450 = vld [vmem:[%s442 + $0x38] sm:$0xff]
    %v451 = vld [vmem:[%s442 + $0x40] sm:$0xff]
    %v452 = vld [vmem:[%s442 + $0x48] sm:$0xff]
    %v453 = vld [vmem:[%s442 + $0x50] sm:$0xff]
    %v454 = vld [vmem:[%s442 + $0x58] sm:$0xff]
    %v455 = vld [vmem:[%s442 + $0x60] sm:$0xff]
    %v456 = vld [vmem:[%s442 + $0x68] sm:$0xff]
    %v457 = vld [vmem:[%s442 + $0x70] sm:$0xff]
    %v458 = vld [vmem:[%s442 + $0x78] sm:$0xff]
    %v459 = vld [vmem:[%s442 + $0x80] sm:$0xff]
    %v460 = vld [vmem:[%s442 + $0x88] sm:$0xff]
    %v461 = vld [vmem:[%s442 + $0x90] sm:$0xff]
    %v462 = vld [vmem:[%s442 + $0x98] sm:$0xff]
    %v463 = vld [vmem:[%s442 + $0xa0] sm:$0xff]
    %v464 = vld [vmem:[%s442 + $0xa8] sm:$0xff]
    %v465 = vld [vmem:[%s442 + $0xb0] sm:$0xff]
    %v466 = vld [vmem:[%s442 + $0xb8] sm:$0xff]
    %v467 = vld [vmem:[%s442 + $0xc0] sm:$0xff]
    %v468 = vld [vmem:[%s442 + $0xc8] sm:$0xff]
    %v469 = vld [vmem:[%s442 + $0xd0] sm:$0xff]
    %v470 = vld [vmem:[%s442 + $0xd8] sm:$0xff]
    %v471 = vld [vmem:[%s442 + $0xe0] sm:$0xff]
    %v472 = vld [vmem:[%s442 + $0xe8] sm:$0xff]
    %v473 = vld [vmem:[%s442 + $0xf0] sm:$0xff]
    %v474 = vld [vmem:[%s442 + $0xf8] sm:$0xff]
    %v475 = vlaneseq
    %v476 = vshrl.u32 %v475, 7
    %v477 = vsub.s32 0, %v476
    %v478 = vrot.slane %v407, %v477
    %v479 = vlaneseq
    %v480 = vshrl.u32 %v479, 7
    %v481 = vsub.s32 0, %v480
    %v482 = vrot.slane %v408, %v481
    %v483 = vlaneseq
    %v484 = vshrl.u32 %v483, 7
    %v485 = vsub.s32 0, %v484
    %v486 = vrot.slane %v409, %v485
    %v487 = vlaneseq
    %v488 = vshrl.u32 %v487, 7
    %v489 = vsub.s32 0, %v488
    %v490 = vrot.slane %v410, %v489
    %v491 = vlaneseq
    %v492 = vshrl.u32 %v491, 7
    %v493 = vsub.s32 0, %v492
    %v494 = vrot.slane %v411, %v493
    %v495 = vlaneseq
    %v496 = vshrl.u32 %v495, 7
    %v497 = vsub.s32 0, %v496
    %v498 = vrot.slane %v412, %v497
    %v499 = vlaneseq
    %v500 = vshrl.u32 %v499, 7
    %v501 = vsub.s32 0, %v500
    %v502 = vrot.slane %v413, %v501
    %v503 = vlaneseq
    %v504 = vshrl.u32 %v503, 7
    %v505 = vsub.s32 0, %v504
    %v506 = vrot.slane %v414, %v505
    %v507 = vlaneseq
    %v508 = vshrl.u32 %v507, 7
    %v509 = vsub.s32 0, %v508
    %v510 = vrot.slane %v415, %v509
    %v511 = vlaneseq
    %v512 = vshrl.u32 %v511, 7
    %v513 = vsub.s32 0, %v512
    %v514 = vrot.slane %v416, %v513
    %v515 = vlaneseq
    %v516 = vshrl.u32 %v515, 7
    %v517 = vsub.s32 0, %v516
    %v518 = vrot.slane %v417, %v517
    %v519 = vlaneseq
    %v520 = vshrl.u32 %v519, 7
    %v521 = vsub.s32 0, %v520
    %v522 = vrot.slane %v418, %v521
    %v523 = vlaneseq
    %v524 = vshrl.u32 %v523, 7
    %v525 = vsub.s32 0, %v524
    %v526 = vrot.slane %v419, %v525
    %v527 = vlaneseq
    %v528 = vshrl.u32 %v527, 7
    %v529 = vsub.s32 0, %v528
    %v530 = vrot.slane %v420, %v529
    %v531 = vlaneseq
    %v532 = vshrl.u32 %v531, 7
    %v533 = vsub.s32 0, %v532
    %v534 = vrot.slane %v421, %v533
    %v535 = vlaneseq
    %v536 = vshrl.u32 %v535, 7
    %v537 = vsub.s32 0, %v536
    %v538 = vrot.slane %v422, %v537
    %v539 = vmul.f32 %v443, %v478
    %v540 = vmul.f32 %v444, %v478
    %v541 = vmul.f32 %v445, %v482
    %v542 = vmul.f32 %v446, %v482
    %v543 = vmul.f32 %v447, %v486
    %v544 = vmul.f32 %v448, %v486
    %v545 = vmul.f32 %v449, %v490
    %v546 = vmul.f32 %v450, %v490
    %v547 = vmul.f32 %v451, %v494
    %v548 = vmul.f32 %v452, %v494
    %v549 = vmul.f32 %v453, %v498
    %v550 = vmul.f32 %v454, %v498
    %v551 = vmul.f32 %v455, %v502
    %v552 = vmul.f32 %v456, %v502
    %v553 = vmul.f32 %v457, %v506
    %v554 = vmul.f32 %v458, %v506
    %v555 = vmul.f32 %v459, %v510
    %v556 = vmul.f32 %v460, %v510
    %v557 = vmul.f32 %v461, %v514
    %v558 = vmul.f32 %v462, %v514
    %v559 = vmul.f32 %v463, %v518
    %v560 = vmul.f32 %v464, %v518
    %v561 = vmul.f32 %v465, %v522
    %v562 = vmul.f32 %v466, %v522
    %v563 = vmul.f32 %v467, %v526
    %v564 = vmul.f32 %v468, %v526
    %v565 = vmul.f32 %v469, %v530
    %v566 = vmul.f32 %v470, %v530
    %v567 = vmul.f32 %v471, %v534
    %v568 = vmul.f32 %v472, %v534
    %v569 = vmul.f32 %v473, %v538
    %v570 = vmul.f32 %v474, %v538
    %v571 = vadd.f32 %v539, %v541
    %v572 = vadd.f32 %v571, %v543
    %v573 = vadd.f32 %v572, %v545
    %v574 = vadd.f32 %v573, %v547
    %v575 = vadd.f32 %v574, %v549
    %v576 = vadd.f32 %v575, %v551
    %v577 = vadd.f32 %v576, %v553
    %v578 = vadd.f32 %v577, %v555
    %v579 = vadd.f32 %v578, %v557
    %v580 = vadd.f32 %v579, %v559
    %v581 = vadd.f32 %v580, %v561
    %v582 = vadd.f32 %v581, %v563
    %v583 = vadd.f32 %v582, %v565
    %v584 = vadd.f32 %v583, %v567
    %v585 = vadd.f32 %v584, %v569
    %v586 = vadd.f32 %v540, %v542
    %v587 = vadd.f32 %v586, %v544
    %v588 = vadd.f32 %v587, %v546
    %v589 = vadd.f32 %v588, %v548
    %v590 = vadd.f32 %v589, %v550
    %v591 = vadd.f32 %v590, %v552
    %v592 = vadd.f32 %v591, %v554
    %v593 = vadd.f32 %v592, %v556
    %v594 = vadd.f32 %v593, %v558
    %v595 = vadd.f32 %v594, %v560
    %v596 = vadd.f32 %v595, %v562
    %v597 = vadd.f32 %v596, %v564
    %v598 = vadd.f32 %v597, %v566
    %v599 = vadd.f32 %v598, %v568
    %v600 = vadd.f32 %v599, %v570
    %v601 = vmul.f32 %v585, %v439
    %v602 = vmul.f32 %v600, %v440
    %v603 = vadd.f32 %v601, %v602
    %v604 = vrot.slane %v603, 4
    %v605 = vadd.f32 %v603, %v604
    %v606 = vrot.slane %v605, 2
    %v607 = vadd.f32 %v605, %v606
    %v608 = vrot.slane %v607, 1
    %v609 = vadd.f32 %v607, %v608
    %v610 = vsub.s32 %v340, %v339
    %v611 = vsub.s32 %v342, %v341
    %v612 = vmul.u32 %v610, %v611
    %v613 = vcvt.s32.f32 %v612
    %vm614 = vcmp.le.s32.totalorder %v340, %v339
    %vm615 = vcmp.le.s32.totalorder %v342, %v341
    %vm616 = vmor %vm614, %vm615
    %v617 = vmax.f32 %v613, 1.0
    %v618 = vrcp.pop %v617
    %v619 = vmul.f32 1.0, %v618
    %v620 = vsel %vm616, 0.0, %v619
    %v621 = vmul.f32 %v609, %v620
    %622 = vst [vmem:[#allocation9 + $0x1] sm:$0x1] %v621
    %s623 = sadd.s32 %s45, 2
    %s624 = sld [smem:[#allocation3 + %s623]]
    %v625 = vld [vmem:[#allocation7 + $0x2] sm:$0x1]
    %v626 = vld [vmem:[%s51 + $0x2] sm:$0x1]
    %v627 = vld [vmem:[%s53 + $0x2] sm:$0x1]
    %v628 = vld [vmem:[%s55 + $0x2] sm:$0x1]
    %vm629 = vcmp.le.s32.totalorder %v625, 0
    %vm630 = vcmp.le.s32.totalorder %v625, 1
    %vm631 = vcmp.le.s32.totalorder %v625, 2
    %vm632 = vcmp.le.s32.totalorder %v625, 3
    %vm633 = vcmp.le.s32.totalorder %v625, 4
    %vm634 = vcmp.le.s32.totalorder %v625, 5
    %vm635 = vcmp.le.s32.totalorder %v625, 6
    %vm636 = vcmp.le.s32.totalorder %v625, 7
    %vm637 = vcmp.le.s32.totalorder %v625, 8
    %vm638 = vcmp.le.s32.totalorder %v625, 9
    %vm639 = vcmp.le.s32.totalorder %v625, 10
    %vm640 = vcmp.le.s32.totalorder %v625, 11
    %vm641 = vcmp.le.s32.totalorder %v625, 12
    %vm642 = vcmp.le.s32.totalorder %v625, 13
    %vm643 = vcmp.le.s32.totalorder %v625, 14
    %vm644 = vcmp.le.s32.totalorder %v625, 15
    %vm645 = vcmp.gt.s32.totalorder %v626, 0
    %vm646 = vcmp.gt.s32.totalorder %v626, 1
    %vm647 = vcmp.gt.s32.totalorder %v626, 2
    %vm648 = vcmp.gt.s32.totalorder %v626, 3
    %vm649 = vcmp.gt.s32.totalorder %v626, 4
    %vm650 = vcmp.gt.s32.totalorder %v626, 5
    %vm651 = vcmp.gt.s32.totalorder %v626, 6
    %vm652 = vcmp.gt.s32.totalorder %v626, 7
    %vm653 = vcmp.gt.s32.totalorder %v626, 8
    %vm654 = vcmp.gt.s32.totalorder %v626, 9
    %vm655 = vcmp.gt.s32.totalorder %v626, 10
    %vm656 = vcmp.gt.s32.totalorder %v626, 11
    %vm657 = vcmp.gt.s32.totalorder %v626, 12
    %vm658 = vcmp.gt.s32.totalorder %v626, 13
    %vm659 = vcmp.gt.s32.totalorder %v626, 14
    %vm660 = vcmp.gt.s32.totalorder %v626, 15
    %vm661 = vmand %vm629, %vm645
    %vm662 = vmand %vm630, %vm646
    %vm663 = vmand %vm631, %vm647
    %vm664 = vmand %vm632, %vm648
    %vm665 = vmand %vm633, %vm649
    %vm666 = vmand %vm634, %vm650
    %vm667 = vmand %vm635, %vm651
    %vm668 = vmand %vm636, %vm652
    %vm669 = vmand %vm637, %vm653
    %vm670 = vmand %vm638, %vm654
    %vm671 = vmand %vm639, %vm655
    %vm672 = vmand %vm640, %vm656
    %vm673 = vmand %vm641, %vm657
    %vm674 = vmand %vm642, %vm658
    %vm675 = vmand %vm643, %vm659
    %vm676 = vmand %vm644, %vm660
    %v677 = vsel %vm661, 1, 0
    %v678 = vsel %vm662, 1, 0
    %v679 = vsel %vm663, 1, 0
    %v680 = vsel %vm664, 1, 0
    %v681 = vsel %vm665, 1, 0
    %v682 = vsel %vm666, 1, 0
    %v683 = vsel %vm667, 1, 0
    %v684 = vsel %vm668, 1, 0
    %v685 = vsel %vm669, 1, 0
    %v686 = vsel %vm670, 1, 0
    %v687 = vsel %vm671, 1, 0
    %v688 = vsel %vm672, 1, 0
    %v689 = vsel %vm673, 1, 0
    %v690 = vsel %vm674, 1, 0
    %v691 = vsel %vm675, 1, 0
    %v692 = vsel %vm676, 1, 0
    %v693 = vcvt.s32.f32 %v677
    %v694 = vcvt.s32.f32 %v678
    %v695 = vcvt.s32.f32 %v679
    %v696 = vcvt.s32.f32 %v680
    %v697 = vcvt.s32.f32 %v681
    %v698 = vcvt.s32.f32 %v682
    %v699 = vcvt.s32.f32 %v683
    %v700 = vcvt.s32.f32 %v684
    %v701 = vcvt.s32.f32 %v685
    %v702 = vcvt.s32.f32 %v686
    %v703 = vcvt.s32.f32 %v687
    %v704 = vcvt.s32.f32 %v688
    %v705 = vcvt.s32.f32 %v689
    %v706 = vcvt.s32.f32 %v690
    %v707 = vcvt.s32.f32 %v691
    %v708 = vcvt.s32.f32 %v692
    %v709 = vlaneseq
    %v710 = vshrl.u32 %v709, 7
    %v711 = vsub.s32 0, %v710
    %v712 = vrot.slane %v627, %v711
    %vm713 = vcmp.ge.s32.totalorder %v47, %v712
    %vm714 = vcmp.ge.s32.totalorder %v48, %v712
    %v715 = vlaneseq
    %v716 = vshrl.u32 %v715, 7
    %v717 = vsub.s32 0, %v716
    %v718 = vrot.slane %v628, %v717
    %vm719 = vcmp.lt.s32.totalorder %v47, %v718
    %vm720 = vcmp.lt.s32.totalorder %v48, %v718
    %vm721 = vmand %vm713, %vm719
    %vm722 = vmand %vm714, %vm720
    %v723 = vsel %vm721, 1, 0
    %v724 = vsel %vm722, 1, 0
    %v725 = vcvt.s32.f32 %v723
    %v726 = vcvt.s32.f32 %v724
    %s727 = smul.u32 %s624, 256
    %s728 = scalar_lea.vmem [#allocation4], %s727
    %v729 = vld [vmem:[%s728] sm:$0xff]
    %v730 = vld [vmem:[%s728 + $0x8] sm:$0xff]
    %v731 = vld [vmem:[%s728 + $0x10] sm:$0xff]
    %v732 = vld [vmem:[%s728 + $0x18] sm:$0xff]
    %v733 = vld [vmem:[%s728 + $0x20] sm:$0xff]
    %v734 = vld [vmem:[%s728 + $0x28] sm:$0xff]
    %v735 = vld [vmem:[%s728 + $0x30] sm:$0xff]
    %v736 = vld [vmem:[%s728 + $0x38] sm:$0xff]
    %v737 = vld [vmem:[%s728 + $0x40] sm:$0xff]
    %v738 = vld [vmem:[%s728 + $0x48] sm:$0xff]
    %v739 = vld [vmem:[%s728 + $0x50] sm:$0xff]
    %v740 = vld [vmem:[%s728 + $0x58] sm:$0xff]
    %v741 = vld [vmem:[%s728 + $0x60] sm:$0xff]
    %v742 = vld [vmem:[%s728 + $0x68] sm:$0xff]
    %v743 = vld [vmem:[%s728 + $0x70] sm:$0xff]
    %v744 = vld [vmem:[%s728 + $0x78] sm:$0xff]
    %v745 = vld [vmem:[%s728 + $0x80] sm:$0xff]
    %v746 = vld [vmem:[%s728 + $0x88] sm:$0xff]
    %v747 = vld [vmem:[%s728 + $0x90] sm:$0xff]
    %v748 = vld [vmem:[%s728 + $0x98] sm:$0xff]
    %v749 = vld [vmem:[%s728 + $0xa0] sm:$0xff]
    %v750 = vld [vmem:[%s728 + $0xa8] sm:$0xff]
    %v751 = vld [vmem:[%s728 + $0xb0] sm:$0xff]
    %v752 = vld [vmem:[%s728 + $0xb8] sm:$0xff]
    %v753 = vld [vmem:[%s728 + $0xc0] sm:$0xff]
    %v754 = vld [vmem:[%s728 + $0xc8] sm:$0xff]
    %v755 = vld [vmem:[%s728 + $0xd0] sm:$0xff]
    %v756 = vld [vmem:[%s728 + $0xd8] sm:$0xff]
    %v757 = vld [vmem:[%s728 + $0xe0] sm:$0xff]
    %v758 = vld [vmem:[%s728 + $0xe8] sm:$0xff]
    %v759 = vld [vmem:[%s728 + $0xf0] sm:$0xff]
    %v760 = vld [vmem:[%s728 + $0xf8] sm:$0xff]
    %v761 = vlaneseq
    %v762 = vshrl.u32 %v761, 7
    %v763 = vsub.s32 0, %v762
    %v764 = vrot.slane %v693, %v763
    %v765 = vlaneseq
    %v766 = vshrl.u32 %v765, 7
    %v767 = vsub.s32 0, %v766
    %v768 = vrot.slane %v694, %v767
    %v769 = vlaneseq
    %v770 = vshrl.u32 %v769, 7
    %v771 = vsub.s32 0, %v770
    %v772 = vrot.slane %v695, %v771
    %v773 = vlaneseq
    %v774 = vshrl.u32 %v773, 7
    %v775 = vsub.s32 0, %v774
    %v776 = vrot.slane %v696, %v775
    %v777 = vlaneseq
    %v778 = vshrl.u32 %v777, 7
    %v779 = vsub.s32 0, %v778
    %v780 = vrot.slane %v697, %v779
    %v781 = vlaneseq
    %v782 = vshrl.u32 %v781, 7
    %v783 = vsub.s32 0, %v782
    %v784 = vrot.slane %v698, %v783
    %v785 = vlaneseq
    %v786 = vshrl.u32 %v785, 7
    %v787 = vsub.s32 0, %v786
    %v788 = vrot.slane %v699, %v787
    %v789 = vlaneseq
    %v790 = vshrl.u32 %v789, 7
    %v791 = vsub.s32 0, %v790
    %v792 = vrot.slane %v700, %v791
    %v793 = vlaneseq
    %v794 = vshrl.u32 %v793, 7
    %v795 = vsub.s32 0, %v794
    %v796 = vrot.slane %v701, %v795
    %v797 = vlaneseq
    %v798 = vshrl.u32 %v797, 7
    %v799 = vsub.s32 0, %v798
    %v800 = vrot.slane %v702, %v799
    %v801 = vlaneseq
    %v802 = vshrl.u32 %v801, 7
    %v803 = vsub.s32 0, %v802
    %v804 = vrot.slane %v703, %v803
    %v805 = vlaneseq
    %v806 = vshrl.u32 %v805, 7
    %v807 = vsub.s32 0, %v806
    %v808 = vrot.slane %v704, %v807
    %v809 = vlaneseq
    %v810 = vshrl.u32 %v809, 7
    %v811 = vsub.s32 0, %v810
    %v812 = vrot.slane %v705, %v811
    %v813 = vlaneseq
    %v814 = vshrl.u32 %v813, 7
    %v815 = vsub.s32 0, %v814
    %v816 = vrot.slane %v706, %v815
    %v817 = vlaneseq
    %v818 = vshrl.u32 %v817, 7
    %v819 = vsub.s32 0, %v818
    %v820 = vrot.slane %v707, %v819
    %v821 = vlaneseq
    %v822 = vshrl.u32 %v821, 7
    %v823 = vsub.s32 0, %v822
    %v824 = vrot.slane %v708, %v823
    %v825 = vmul.f32 %v729, %v764
    %v826 = vmul.f32 %v730, %v764
    %v827 = vmul.f32 %v731, %v768
    %v828 = vmul.f32 %v732, %v768
    %v829 = vmul.f32 %v733, %v772
    %v830 = vmul.f32 %v734, %v772
    %v831 = vmul.f32 %v735, %v776
    %v832 = vmul.f32 %v736, %v776
    %v833 = vmul.f32 %v737, %v780
    %v834 = vmul.f32 %v738, %v780
    %v835 = vmul.f32 %v739, %v784
    %v836 = vmul.f32 %v740, %v784
    %v837 = vmul.f32 %v741, %v788
    %v838 = vmul.f32 %v742, %v788
    %v839 = vmul.f32 %v743, %v792
    %v840 = vmul.f32 %v744, %v792
    %v841 = vmul.f32 %v745, %v796
    %v842 = vmul.f32 %v746, %v796
    %v843 = vmul.f32 %v747, %v800
    %v844 = vmul.f32 %v748, %v800
    %v845 = vmul.f32 %v749, %v804
    %v846 = vmul.f32 %v750, %v804
    %v847 = vmul.f32 %v751, %v808
    %v848 = vmul.f32 %v752, %v808
    %v849 = vmul.f32 %v753, %v812
    %v850 = vmul.f32 %v754, %v812
    %v851 = vmul.f32 %v755, %v816
    %v852 = vmul.f32 %v756, %v816
    %v853 = vmul.f32 %v757, %v820
    %v854 = vmul.f32 %v758, %v820
    %v855 = vmul.f32 %v759, %v824
    %v856 = vmul.f32 %v760, %v824
    %v857 = vadd.f32 %v825, %v827
    %v858 = vadd.f32 %v857, %v829
    %v859 = vadd.f32 %v858, %v831
    %v860 = vadd.f32 %v859, %v833
    %v861 = vadd.f32 %v860, %v835
    %v862 = vadd.f32 %v861, %v837
    %v863 = vadd.f32 %v862, %v839
    %v864 = vadd.f32 %v863, %v841
    %v865 = vadd.f32 %v864, %v843
    %v866 = vadd.f32 %v865, %v845
    %v867 = vadd.f32 %v866, %v847
    %v868 = vadd.f32 %v867, %v849
    %v869 = vadd.f32 %v868, %v851
    %v870 = vadd.f32 %v869, %v853
    %v871 = vadd.f32 %v870, %v855
    %v872 = vadd.f32 %v826, %v828
    %v873 = vadd.f32 %v872, %v830
    %v874 = vadd.f32 %v873, %v832
    %v875 = vadd.f32 %v874, %v834
    %v876 = vadd.f32 %v875, %v836
    %v877 = vadd.f32 %v876, %v838
    %v878 = vadd.f32 %v877, %v840
    %v879 = vadd.f32 %v878, %v842
    %v880 = vadd.f32 %v879, %v844
    %v881 = vadd.f32 %v880, %v846
    %v882 = vadd.f32 %v881, %v848
    %v883 = vadd.f32 %v882, %v850
    %v884 = vadd.f32 %v883, %v852
    %v885 = vadd.f32 %v884, %v854
    %v886 = vadd.f32 %v885, %v856
    %v887 = vmul.f32 %v871, %v725
    %v888 = vmul.f32 %v886, %v726
    %v889 = vadd.f32 %v887, %v888
    %v890 = vrot.slane %v889, 4
    %v891 = vadd.f32 %v889, %v890
    %v892 = vrot.slane %v891, 2
    %v893 = vadd.f32 %v891, %v892
    %v894 = vrot.slane %v893, 1
    %v895 = vadd.f32 %v893, %v894
    %v896 = vsub.s32 %v626, %v625
    %v897 = vsub.s32 %v628, %v627
    %v898 = vmul.u32 %v896, %v897
    %v899 = vcvt.s32.f32 %v898
    %vm900 = vcmp.le.s32.totalorder %v626, %v625
    %vm901 = vcmp.le.s32.totalorder %v628, %v627
    %vm902 = vmor %vm900, %vm901
    %v903 = vmax.f32 %v899, 1.0
    %v904 = vrcp.pop %v903
    %v905 = vmul.f32 1.0, %v904
    %v906 = vsel %vm902, 0.0, %v905
    %v907 = vmul.f32 %v895, %v906
    %908 = vst [vmem:[#allocation9 + $0x2] sm:$0x1] %v907
    %s909 = sadd.s32 %s45, 3
    %s910 = sld [smem:[#allocation3 + %s909]]
    %v911 = vld [vmem:[#allocation7 + $0x3] sm:$0x1]
    %v912 = vld [vmem:[%s51 + $0x3] sm:$0x1]
    %v913 = vld [vmem:[%s53 + $0x3] sm:$0x1]
    %v914 = vld [vmem:[%s55 + $0x3] sm:$0x1]
    %vm915 = vcmp.le.s32.totalorder %v911, 0
    %vm916 = vcmp.le.s32.totalorder %v911, 1
    %vm917 = vcmp.le.s32.totalorder %v911, 2
    %vm918 = vcmp.le.s32.totalorder %v911, 3
    %vm919 = vcmp.le.s32.totalorder %v911, 4
    %vm920 = vcmp.le.s32.totalorder %v911, 5
    %vm921 = vcmp.le.s32.totalorder %v911, 6
    %vm922 = vcmp.le.s32.totalorder %v911, 7
    %vm923 = vcmp.le.s32.totalorder %v911, 8
    %vm924 = vcmp.le.s32.totalorder %v911, 9
    %vm925 = vcmp.le.s32.totalorder %v911, 10
    %vm926 = vcmp.le.s32.totalorder %v911, 11
    %vm927 = vcmp.le.s32.totalorder %v911, 12
    %vm928 = vcmp.le.s32.totalorder %v911, 13
    %vm929 = vcmp.le.s32.totalorder %v911, 14
    %vm930 = vcmp.le.s32.totalorder %v911, 15
    %vm931 = vcmp.gt.s32.totalorder %v912, 0
    %vm932 = vcmp.gt.s32.totalorder %v912, 1
    %vm933 = vcmp.gt.s32.totalorder %v912, 2
    %vm934 = vcmp.gt.s32.totalorder %v912, 3
    %vm935 = vcmp.gt.s32.totalorder %v912, 4
    %vm936 = vcmp.gt.s32.totalorder %v912, 5
    %vm937 = vcmp.gt.s32.totalorder %v912, 6
    %vm938 = vcmp.gt.s32.totalorder %v912, 7
    %vm939 = vcmp.gt.s32.totalorder %v912, 8
    %vm940 = vcmp.gt.s32.totalorder %v912, 9
    %vm941 = vcmp.gt.s32.totalorder %v912, 10
    %vm942 = vcmp.gt.s32.totalorder %v912, 11
    %vm943 = vcmp.gt.s32.totalorder %v912, 12
    %vm944 = vcmp.gt.s32.totalorder %v912, 13
    %vm945 = vcmp.gt.s32.totalorder %v912, 14
    %vm946 = vcmp.gt.s32.totalorder %v912, 15
    %vm947 = vmand %vm915, %vm931
    %vm948 = vmand %vm916, %vm932
    %vm949 = vmand %vm917, %vm933
    %vm950 = vmand %vm918, %vm934
    %vm951 = vmand %vm919, %vm935
    %vm952 = vmand %vm920, %vm936
    %vm953 = vmand %vm921, %vm937
    %vm954 = vmand %vm922, %vm938
    %vm955 = vmand %vm923, %vm939
    %vm956 = vmand %vm924, %vm940
    %vm957 = vmand %vm925, %vm941
    %vm958 = vmand %vm926, %vm942
    %vm959 = vmand %vm927, %vm943
    %vm960 = vmand %vm928, %vm944
    %vm961 = vmand %vm929, %vm945
    %vm962 = vmand %vm930, %vm946
    %v963 = vsel %vm947, 1, 0
    %v964 = vsel %vm948, 1, 0
    %v965 = vsel %vm949, 1, 0
    %v966 = vsel %vm950, 1, 0
    %v967 = vsel %vm951, 1, 0
    %v968 = vsel %vm952, 1, 0
    %v969 = vsel %vm953, 1, 0
    %v970 = vsel %vm954, 1, 0
    %v971 = vsel %vm955, 1, 0
    %v972 = vsel %vm956, 1, 0
    %v973 = vsel %vm957, 1, 0
    %v974 = vsel %vm958, 1, 0
    %v975 = vsel %vm959, 1, 0
    %v976 = vsel %vm960, 1, 0
    %v977 = vsel %vm961, 1, 0
    %v978 = vsel %vm962, 1, 0
    %v979 = vcvt.s32.f32 %v963
    %v980 = vcvt.s32.f32 %v964
    %v981 = vcvt.s32.f32 %v965
    %v982 = vcvt.s32.f32 %v966
    %v983 = vcvt.s32.f32 %v967
    %v984 = vcvt.s32.f32 %v968
    %v985 = vcvt.s32.f32 %v969
    %v986 = vcvt.s32.f32 %v970
    %v987 = vcvt.s32.f32 %v971
    %v988 = vcvt.s32.f32 %v972
    %v989 = vcvt.s32.f32 %v973
    %v990 = vcvt.s32.f32 %v974
    %v991 = vcvt.s32.f32 %v975
    %v992 = vcvt.s32.f32 %v976
    %v993 = vcvt.s32.f32 %v977
    %v994 = vcvt.s32.f32 %v978
    %v995 = vlaneseq
    %v996 = vshrl.u32 %v995, 7
    %v997 = vsub.s32 0, %v996
    %v998 = vrot.slane %v913, %v997
    %vm999 = vcmp.ge.s32.totalorder %v47, %v998
    %vm1000 = vcmp.ge.s32.totalorder %v48, %v998
    %v1001 = vlaneseq
    %v1002 = vshrl.u32 %v1001, 7
    %v1003 = vsub.s32 0, %v1002
    %v1004 = vrot.slane %v914, %v1003
    %vm1005 = vcmp.lt.s32.totalorder %v47, %v1004
    %vm1006 = vcmp.lt.s32.totalorder %v48, %v1004
    %vm1007 = vmand %vm999, %vm1005
    %vm1008 = vmand %vm1000, %vm1006
    %v1009 = vsel %vm1007, 1, 0
    %v1010 = vsel %vm1008, 1, 0
    %v1011 = vcvt.s32.f32 %v1009
    %v1012 = vcvt.s32.f32 %v1010
    %s1013 = smul.u32 %s910, 256
    %s1014 = scalar_lea.vmem [#allocation4], %s1013
    %v1015 = vld [vmem:[%s1014] sm:$0xff]
    %v1016 = vld [vmem:[%s1014 + $0x8] sm:$0xff]
    %v1017 = vld [vmem:[%s1014 + $0x10] sm:$0xff]
    %v1018 = vld [vmem:[%s1014 + $0x18] sm:$0xff]
    %v1019 = vld [vmem:[%s1014 + $0x20] sm:$0xff]
    %v1020 = vld [vmem:[%s1014 + $0x28] sm:$0xff]
    %v1021 = vld [vmem:[%s1014 + $0x30] sm:$0xff]
    %v1022 = vld [vmem:[%s1014 + $0x38] sm:$0xff]
    %v1023 = vld [vmem:[%s1014 + $0x40] sm:$0xff]
    %v1024 = vld [vmem:[%s1014 + $0x48] sm:$0xff]
    %v1025 = vld [vmem:[%s1014 + $0x50] sm:$0xff]
    %v1026 = vld [vmem:[%s1014 + $0x58] sm:$0xff]
    %v1027 = vld [vmem:[%s1014 + $0x60] sm:$0xff]
    %v1028 = vld [vmem:[%s1014 + $0x68] sm:$0xff]
    %v1029 = vld [vmem:[%s1014 + $0x70] sm:$0xff]
    %v1030 = vld [vmem:[%s1014 + $0x78] sm:$0xff]
    %v1031 = vld [vmem:[%s1014 + $0x80] sm:$0xff]
    %v1032 = vld [vmem:[%s1014 + $0x88] sm:$0xff]
    %v1033 = vld [vmem:[%s1014 + $0x90] sm:$0xff]
    %v1034 = vld [vmem:[%s1014 + $0x98] sm:$0xff]
    %v1035 = vld [vmem:[%s1014 + $0xa0] sm:$0xff]
    %v1036 = vld [vmem:[%s1014 + $0xa8] sm:$0xff]
    %v1037 = vld [vmem:[%s1014 + $0xb0] sm:$0xff]
    %v1038 = vld [vmem:[%s1014 + $0xb8] sm:$0xff]
    %v1039 = vld [vmem:[%s1014 + $0xc0] sm:$0xff]
    %v1040 = vld [vmem:[%s1014 + $0xc8] sm:$0xff]
    %v1041 = vld [vmem:[%s1014 + $0xd0] sm:$0xff]
    %v1042 = vld [vmem:[%s1014 + $0xd8] sm:$0xff]
    %v1043 = vld [vmem:[%s1014 + $0xe0] sm:$0xff]
    %v1044 = vld [vmem:[%s1014 + $0xe8] sm:$0xff]
    %v1045 = vld [vmem:[%s1014 + $0xf0] sm:$0xff]
    %v1046 = vld [vmem:[%s1014 + $0xf8] sm:$0xff]
    %v1047 = vlaneseq
    %v1048 = vshrl.u32 %v1047, 7
    %v1049 = vsub.s32 0, %v1048
    %v1050 = vrot.slane %v979, %v1049
    %v1051 = vlaneseq
    %v1052 = vshrl.u32 %v1051, 7
    %v1053 = vsub.s32 0, %v1052
    %v1054 = vrot.slane %v980, %v1053
    %v1055 = vlaneseq
    %v1056 = vshrl.u32 %v1055, 7
    %v1057 = vsub.s32 0, %v1056
    %v1058 = vrot.slane %v981, %v1057
    %v1059 = vlaneseq
    %v1060 = vshrl.u32 %v1059, 7
    %v1061 = vsub.s32 0, %v1060
    %v1062 = vrot.slane %v982, %v1061
    %v1063 = vlaneseq
    %v1064 = vshrl.u32 %v1063, 7
    %v1065 = vsub.s32 0, %v1064
    %v1066 = vrot.slane %v983, %v1065
    %v1067 = vlaneseq
    %v1068 = vshrl.u32 %v1067, 7
    %v1069 = vsub.s32 0, %v1068
    %v1070 = vrot.slane %v984, %v1069
    %v1071 = vlaneseq
    %v1072 = vshrl.u32 %v1071, 7
    %v1073 = vsub.s32 0, %v1072
    %v1074 = vrot.slane %v985, %v1073
    %v1075 = vlaneseq
    %v1076 = vshrl.u32 %v1075, 7
    %v1077 = vsub.s32 0, %v1076
    %v1078 = vrot.slane %v986, %v1077
    %v1079 = vlaneseq
    %v1080 = vshrl.u32 %v1079, 7
    %v1081 = vsub.s32 0, %v1080
    %v1082 = vrot.slane %v987, %v1081
    %v1083 = vlaneseq
    %v1084 = vshrl.u32 %v1083, 7
    %v1085 = vsub.s32 0, %v1084
    %v1086 = vrot.slane %v988, %v1085
    %v1087 = vlaneseq
    %v1088 = vshrl.u32 %v1087, 7
    %v1089 = vsub.s32 0, %v1088
    %v1090 = vrot.slane %v989, %v1089
    %v1091 = vlaneseq
    %v1092 = vshrl.u32 %v1091, 7
    %v1093 = vsub.s32 0, %v1092
    %v1094 = vrot.slane %v990, %v1093
    %v1095 = vlaneseq
    %v1096 = vshrl.u32 %v1095, 7
    %v1097 = vsub.s32 0, %v1096
    %v1098 = vrot.slane %v991, %v1097
    %v1099 = vlaneseq
    %v1100 = vshrl.u32 %v1099, 7
    %v1101 = vsub.s32 0, %v1100
    %v1102 = vrot.slane %v992, %v1101
    %v1103 = vlaneseq
    %v1104 = vshrl.u32 %v1103, 7
    %v1105 = vsub.s32 0, %v1104
    %v1106 = vrot.slane %v993, %v1105
    %v1107 = vlaneseq
    %v1108 = vshrl.u32 %v1107, 7
    %v1109 = vsub.s32 0, %v1108
    %v1110 = vrot.slane %v994, %v1109
    %v1111 = vmul.f32 %v1015, %v1050
    %v1112 = vmul.f32 %v1016, %v1050
    %v1113 = vmul.f32 %v1017, %v1054
    %v1114 = vmul.f32 %v1018, %v1054
    %v1115 = vmul.f32 %v1019, %v1058
    %v1116 = vmul.f32 %v1020, %v1058
    %v1117 = vmul.f32 %v1021, %v1062
    %v1118 = vmul.f32 %v1022, %v1062
    %v1119 = vmul.f32 %v1023, %v1066
    %v1120 = vmul.f32 %v1024, %v1066
    %v1121 = vmul.f32 %v1025, %v1070
    %v1122 = vmul.f32 %v1026, %v1070
    %v1123 = vmul.f32 %v1027, %v1074
    %v1124 = vmul.f32 %v1028, %v1074
    %v1125 = vmul.f32 %v1029, %v1078
    %v1126 = vmul.f32 %v1030, %v1078
    %v1127 = vmul.f32 %v1031, %v1082
    %v1128 = vmul.f32 %v1032, %v1082
    %v1129 = vmul.f32 %v1033, %v1086
    %v1130 = vmul.f32 %v1034, %v1086
    %v1131 = vmul.f32 %v1035, %v1090
    %v1132 = vmul.f32 %v1036, %v1090
    %v1133 = vmul.f32 %v1037, %v1094
    %v1134 = vmul.f32 %v1038, %v1094
    %v1135 = vmul.f32 %v1039, %v1098
    %v1136 = vmul.f32 %v1040, %v1098
    %v1137 = vmul.f32 %v1041, %v1102
    %v1138 = vmul.f32 %v1042, %v1102
    %v1139 = vmul.f32 %v1043, %v1106
    %v1140 = vmul.f32 %v1044, %v1106
    %v1141 = vmul.f32 %v1045, %v1110
    %v1142 = vmul.f32 %v1046, %v1110
    %v1143 = vadd.f32 %v1111, %v1113
    %v1144 = vadd.f32 %v1143, %v1115
    %v1145 = vadd.f32 %v1144, %v1117
    %v1146 = vadd.f32 %v1145, %v1119
    %v1147 = vadd.f32 %v1146, %v1121
    %v1148 = vadd.f32 %v1147, %v1123
    %v1149 = vadd.f32 %v1148, %v1125
    %v1150 = vadd.f32 %v1149, %v1127
    %v1151 = vadd.f32 %v1150, %v1129
    %v1152 = vadd.f32 %v1151, %v1131
    %v1153 = vadd.f32 %v1152, %v1133
    %v1154 = vadd.f32 %v1153, %v1135
    %v1155 = vadd.f32 %v1154, %v1137
    %v1156 = vadd.f32 %v1155, %v1139
    %v1157 = vadd.f32 %v1156, %v1141
    %v1158 = vadd.f32 %v1112, %v1114
    %v1159 = vadd.f32 %v1158, %v1116
    %v1160 = vadd.f32 %v1159, %v1118
    %v1161 = vadd.f32 %v1160, %v1120
    %v1162 = vadd.f32 %v1161, %v1122
    %v1163 = vadd.f32 %v1162, %v1124
    %v1164 = vadd.f32 %v1163, %v1126
    %v1165 = vadd.f32 %v1164, %v1128
    %v1166 = vadd.f32 %v1165, %v1130
    %v1167 = vadd.f32 %v1166, %v1132
    %v1168 = vadd.f32 %v1167, %v1134
    %v1169 = vadd.f32 %v1168, %v1136
    %v1170 = vadd.f32 %v1169, %v1138
    %v1171 = vadd.f32 %v1170, %v1140
    %v1172 = vadd.f32 %v1171, %v1142
    %v1173 = vmul.f32 %v1157, %v1011
    %v1174 = vmul.f32 %v1172, %v1012
    %v1175 = vadd.f32 %v1173, %v1174
    %v1176 = vrot.slane %v1175, 4
    %v1177 = vadd.f32 %v1175, %v1176
    %v1178 = vrot.slane %v1177, 2
    %v1179 = vadd.f32 %v1177, %v1178
    %v1180 = vrot.slane %v1179, 1
    %v1181 = vadd.f32 %v1179, %v1180
    %v1182 = vsub.s32 %v912, %v911
    %v1183 = vsub.s32 %v914, %v913
    %v1184 = vmul.u32 %v1182, %v1183
    %v1185 = vcvt.s32.f32 %v1184
    %vm1186 = vcmp.le.s32.totalorder %v912, %v911
    %vm1187 = vcmp.le.s32.totalorder %v914, %v913
    %vm1188 = vmor %vm1186, %vm1187
    %v1189 = vmax.f32 %v1185, 1.0
    %v1190 = vrcp.pop %v1189
    %v1191 = vmul.f32 1.0, %v1190
    %v1192 = vsel %vm1188, 0.0, %v1191
    %v1193 = vmul.f32 %v1181, %v1192
    %1194 = vst [vmem:[#allocation9 + $0x3] sm:$0x1] %v1193
    %s1195 = sadd.s32 %s45, 4
    %s1196 = sld [smem:[#allocation3 + %s1195]]
    %v1197 = vld [vmem:[#allocation7 + $0x4] sm:$0x1]
    %v1198 = vld [vmem:[%s51 + $0x4] sm:$0x1]
    %v1199 = vld [vmem:[%s53 + $0x4] sm:$0x1]
    %v1200 = vld [vmem:[%s55 + $0x4] sm:$0x1]
    %vm1201 = vcmp.le.s32.totalorder %v1197, 0
    %vm1202 = vcmp.le.s32.totalorder %v1197, 1
    %vm1203 = vcmp.le.s32.totalorder %v1197, 2
    %vm1204 = vcmp.le.s32.totalorder %v1197, 3
    %vm1205 = vcmp.le.s32.totalorder %v1197, 4
    %vm1206 = vcmp.le.s32.totalorder %v1197, 5
    %vm1207 = vcmp.le.s32.totalorder %v1197, 6
    %vm1208 = vcmp.le.s32.totalorder %v1197, 7
    %vm1209 = vcmp.le.s32.totalorder %v1197, 8
    %vm1210 = vcmp.le.s32.totalorder %v1197, 9
    %vm1211 = vcmp.le.s32.totalorder %v1197, 10
    %vm1212 = vcmp.le.s32.totalorder %v1197, 11
    %vm1213 = vcmp.le.s32.totalorder %v1197, 12
    %vm1214 = vcmp.le.s32.totalorder %v1197, 13
    %vm1215 = vcmp.le.s32.totalorder %v1197, 14
    %vm1216 = vcmp.le.s32.totalorder %v1197, 15
    %vm1217 = vcmp.gt.s32.totalorder %v1198, 0
    %vm1218 = vcmp.gt.s32.totalorder %v1198, 1
    %vm1219 = vcmp.gt.s32.totalorder %v1198, 2
    %vm1220 = vcmp.gt.s32.totalorder %v1198, 3
    %vm1221 = vcmp.gt.s32.totalorder %v1198, 4
    %vm1222 = vcmp.gt.s32.totalorder %v1198, 5
    %vm1223 = vcmp.gt.s32.totalorder %v1198, 6
    %vm1224 = vcmp.gt.s32.totalorder %v1198, 7
    %vm1225 = vcmp.gt.s32.totalorder %v1198, 8
    %vm1226 = vcmp.gt.s32.totalorder %v1198, 9
    %vm1227 = vcmp.gt.s32.totalorder %v1198, 10
    %vm1228 = vcmp.gt.s32.totalorder %v1198, 11
    %vm1229 = vcmp.gt.s32.totalorder %v1198, 12
    %vm1230 = vcmp.gt.s32.totalorder %v1198, 13
    %vm1231 = vcmp.gt.s32.totalorder %v1198, 14
    %vm1232 = vcmp.gt.s32.totalorder %v1198, 15
    %vm1233 = vmand %vm1201, %vm1217
    %vm1234 = vmand %vm1202, %vm1218
    %vm1235 = vmand %vm1203, %vm1219
    %vm1236 = vmand %vm1204, %vm1220
    %vm1237 = vmand %vm1205, %vm1221
    %vm1238 = vmand %vm1206, %vm1222
    %vm1239 = vmand %vm1207, %vm1223
    %vm1240 = vmand %vm1208, %vm1224
    %vm1241 = vmand %vm1209, %vm1225
    %vm1242 = vmand %vm1210, %vm1226
    %vm1243 = vmand %vm1211, %vm1227
    %vm1244 = vmand %vm1212, %vm1228
    %vm1245 = vmand %vm1213, %vm1229
    %vm1246 = vmand %vm1214, %vm1230
    %vm1247 = vmand %vm1215, %vm1231
    %vm1248 = vmand %vm1216, %vm1232
    %v1249 = vsel %vm1233, 1, 0
    %v1250 = vsel %vm1234, 1, 0
    %v1251 = vsel %vm1235, 1, 0
    %v1252 = vsel %vm1236, 1, 0
    %v1253 = vsel %vm1237, 1, 0
    %v1254 = vsel %vm1238, 1, 0
    %v1255 = vsel %vm1239, 1, 0
    %v1256 = vsel %vm1240, 1, 0
    %v1257 = vsel %vm1241, 1, 0
    %v1258 = vsel %vm1242, 1, 0
    %v1259 = vsel %vm1243, 1, 0
    %v1260 = vsel %vm1244, 1, 0
    %v1261 = vsel %vm1245, 1, 0
    %v1262 = vsel %vm1246, 1, 0
    %v1263 = vsel %vm1247, 1, 0
    %v1264 = vsel %vm1248, 1, 0
    %v1265 = vcvt.s32.f32 %v1249
    %v1266 = vcvt.s32.f32 %v1250
    %v1267 = vcvt.s32.f32 %v1251
    %v1268 = vcvt.s32.f32 %v1252
    %v1269 = vcvt.s32.f32 %v1253
    %v1270 = vcvt.s32.f32 %v1254
    %v1271 = vcvt.s32.f32 %v1255
    %v1272 = vcvt.s32.f32 %v1256
    %v1273 = vcvt.s32.f32 %v1257
    %v1274 = vcvt.s32.f32 %v1258
    %v1275 = vcvt.s32.f32 %v1259
    %v1276 = vcvt.s32.f32 %v1260
    %v1277 = vcvt.s32.f32 %v1261
    %v1278 = vcvt.s32.f32 %v1262
    %v1279 = vcvt.s32.f32 %v1263
    %v1280 = vcvt.s32.f32 %v1264
    %v1281 = vlaneseq
    %v1282 = vshrl.u32 %v1281, 7
    %v1283 = vsub.s32 0, %v1282
    %v1284 = vrot.slane %v1199, %v1283
    %vm1285 = vcmp.ge.s32.totalorder %v47, %v1284
    %vm1286 = vcmp.ge.s32.totalorder %v48, %v1284
    %v1287 = vlaneseq
    %v1288 = vshrl.u32 %v1287, 7
    %v1289 = vsub.s32 0, %v1288
    %v1290 = vrot.slane %v1200, %v1289
    %vm1291 = vcmp.lt.s32.totalorder %v47, %v1290
    %vm1292 = vcmp.lt.s32.totalorder %v48, %v1290
    %vm1293 = vmand %vm1285, %vm1291
    %vm1294 = vmand %vm1286, %vm1292
    %v1295 = vsel %vm1293, 1, 0
    %v1296 = vsel %vm1294, 1, 0
    %v1297 = vcvt.s32.f32 %v1295
    %v1298 = vcvt.s32.f32 %v1296
    %s1299 = smul.u32 %s1196, 256
    %s1300 = scalar_lea.vmem [#allocation4], %s1299
    %v1301 = vld [vmem:[%s1300] sm:$0xff]
    %v1302 = vld [vmem:[%s1300 + $0x8] sm:$0xff]
    %v1303 = vld [vmem:[%s1300 + $0x10] sm:$0xff]
    %v1304 = vld [vmem:[%s1300 + $0x18] sm:$0xff]
    %v1305 = vld [vmem:[%s1300 + $0x20] sm:$0xff]
    %v1306 = vld [vmem:[%s1300 + $0x28] sm:$0xff]
    %v1307 = vld [vmem:[%s1300 + $0x30] sm:$0xff]
    %v1308 = vld [vmem:[%s1300 + $0x38] sm:$0xff]
    %v1309 = vld [vmem:[%s1300 + $0x40] sm:$0xff]
    %v1310 = vld [vmem:[%s1300 + $0x48] sm:$0xff]
    %v1311 = vld [vmem:[%s1300 + $0x50] sm:$0xff]
    %v1312 = vld [vmem:[%s1300 + $0x58] sm:$0xff]
    %v1313 = vld [vmem:[%s1300 + $0x60] sm:$0xff]
    %v1314 = vld [vmem:[%s1300 + $0x68] sm:$0xff]
    %v1315 = vld [vmem:[%s1300 + $0x70] sm:$0xff]
    %v1316 = vld [vmem:[%s1300 + $0x78] sm:$0xff]
    %v1317 = vld [vmem:[%s1300 + $0x80] sm:$0xff]
    %v1318 = vld [vmem:[%s1300 + $0x88] sm:$0xff]
    %v1319 = vld [vmem:[%s1300 + $0x90] sm:$0xff]
    %v1320 = vld [vmem:[%s1300 + $0x98] sm:$0xff]
    %v1321 = vld [vmem:[%s1300 + $0xa0] sm:$0xff]
    %v1322 = vld [vmem:[%s1300 + $0xa8] sm:$0xff]
    %v1323 = vld [vmem:[%s1300 + $0xb0] sm:$0xff]
    %v1324 = vld [vmem:[%s1300 + $0xb8] sm:$0xff]
    %v1325 = vld [vmem:[%s1300 + $0xc0] sm:$0xff]
    %v1326 = vld [vmem:[%s1300 + $0xc8] sm:$0xff]
    %v1327 = vld [vmem:[%s1300 + $0xd0] sm:$0xff]
    %v1328 = vld [vmem:[%s1300 + $0xd8] sm:$0xff]
    %v1329 = vld [vmem:[%s1300 + $0xe0] sm:$0xff]
    %v1330 = vld [vmem:[%s1300 + $0xe8] sm:$0xff]
    %v1331 = vld [vmem:[%s1300 + $0xf0] sm:$0xff]
    %v1332 = vld [vmem:[%s1300 + $0xf8] sm:$0xff]
    %v1333 = vlaneseq
    %v1334 = vshrl.u32 %v1333, 7
    %v1335 = vsub.s32 0, %v1334
    %v1336 = vrot.slane %v1265, %v1335
    %v1337 = vlaneseq
    %v1338 = vshrl.u32 %v1337, 7
    %v1339 = vsub.s32 0, %v1338
    %v1340 = vrot.slane %v1266, %v1339
    %v1341 = vlaneseq
    %v1342 = vshrl.u32 %v1341, 7
    %v1343 = vsub.s32 0, %v1342
    %v1344 = vrot.slane %v1267, %v1343
    %v1345 = vlaneseq
    %v1346 = vshrl.u32 %v1345, 7
    %v1347 = vsub.s32 0, %v1346
    %v1348 = vrot.slane %v1268, %v1347
    %v1349 = vlaneseq
    %v1350 = vshrl.u32 %v1349, 7
    %v1351 = vsub.s32 0, %v1350
    %v1352 = vrot.slane %v1269, %v1351
    %v1353 = vlaneseq
    %v1354 = vshrl.u32 %v1353, 7
    %v1355 = vsub.s32 0, %v1354
    %v1356 = vrot.slane %v1270, %v1355
    %v1357 = vlaneseq
    %v1358 = vshrl.u32 %v1357, 7
    %v1359 = vsub.s32 0, %v1358
    %v1360 = vrot.slane %v1271, %v1359
    %v1361 = vlaneseq
    %v1362 = vshrl.u32 %v1361, 7
    %v1363 = vsub.s32 0, %v1362
    %v1364 = vrot.slane %v1272, %v1363
    %v1365 = vlaneseq
    %v1366 = vshrl.u32 %v1365, 7
    %v1367 = vsub.s32 0, %v1366
    %v1368 = vrot.slane %v1273, %v1367
    %v1369 = vlaneseq
    %v1370 = vshrl.u32 %v1369, 7
    %v1371 = vsub.s32 0, %v1370
    %v1372 = vrot.slane %v1274, %v1371
    %v1373 = vlaneseq
    %v1374 = vshrl.u32 %v1373, 7
    %v1375 = vsub.s32 0, %v1374
    %v1376 = vrot.slane %v1275, %v1375
    %v1377 = vlaneseq
    %v1378 = vshrl.u32 %v1377, 7
    %v1379 = vsub.s32 0, %v1378
    %v1380 = vrot.slane %v1276, %v1379
    %v1381 = vlaneseq
    %v1382 = vshrl.u32 %v1381, 7
    %v1383 = vsub.s32 0, %v1382
    %v1384 = vrot.slane %v1277, %v1383
    %v1385 = vlaneseq
    %v1386 = vshrl.u32 %v1385, 7
    %v1387 = vsub.s32 0, %v1386
    %v1388 = vrot.slane %v1278, %v1387
    %v1389 = vlaneseq
    %v1390 = vshrl.u32 %v1389, 7
    %v1391 = vsub.s32 0, %v1390
    %v1392 = vrot.slane %v1279, %v1391
    %v1393 = vlaneseq
    %v1394 = vshrl.u32 %v1393, 7
    %v1395 = vsub.s32 0, %v1394
    %v1396 = vrot.slane %v1280, %v1395
    %v1397 = vmul.f32 %v1301, %v1336
    %v1398 = vmul.f32 %v1302, %v1336
    %v1399 = vmul.f32 %v1303, %v1340
    %v1400 = vmul.f32 %v1304, %v1340
    %v1401 = vmul.f32 %v1305, %v1344
    %v1402 = vmul.f32 %v1306, %v1344
    %v1403 = vmul.f32 %v1307, %v1348
    %v1404 = vmul.f32 %v1308, %v1348
    %v1405 = vmul.f32 %v1309, %v1352
    %v1406 = vmul.f32 %v1310, %v1352
    %v1407 = vmul.f32 %v1311, %v1356
    %v1408 = vmul.f32 %v1312, %v1356
    %v1409 = vmul.f32 %v1313, %v1360
    %v1410 = vmul.f32 %v1314, %v1360
    %v1411 = vmul.f32 %v1315, %v1364
    %v1412 = vmul.f32 %v1316, %v1364
    %v1413 = vmul.f32 %v1317, %v1368
    %v1414 = vmul.f32 %v1318, %v1368
    %v1415 = vmul.f32 %v1319, %v1372
    %v1416 = vmul.f32 %v1320, %v1372
    %v1417 = vmul.f32 %v1321, %v1376
    %v1418 = vmul.f32 %v1322, %v1376
    %v1419 = vmul.f32 %v1323, %v1380
    %v1420 = vmul.f32 %v1324, %v1380
    %v1421 = vmul.f32 %v1325, %v1384
    %v1422 = vmul.f32 %v1326, %v1384
    %v1423 = vmul.f32 %v1327, %v1388
    %v1424 = vmul.f32 %v1328, %v1388
    %v1425 = vmul.f32 %v1329, %v1392
    %v1426 = vmul.f32 %v1330, %v1392
    %v1427 = vmul.f32 %v1331, %v1396
    %v1428 = vmul.f32 %v1332, %v1396
    %v1429 = vadd.f32 %v1397, %v1399
    %v1430 = vadd.f32 %v1429, %v1401
    %v1431 = vadd.f32 %v1430, %v1403
    %v1432 = vadd.f32 %v1431, %v1405
    %v1433 = vadd.f32 %v1432, %v1407
    %v1434 = vadd.f32 %v1433, %v1409
    %v1435 = vadd.f32 %v1434, %v1411
    %v1436 = vadd.f32 %v1435, %v1413
    %v1437 = vadd.f32 %v1436, %v1415
    %v1438 = vadd.f32 %v1437, %v1417
    %v1439 = vadd.f32 %v1438, %v1419
    %v1440 = vadd.f32 %v1439, %v1421
    %v1441 = vadd.f32 %v1440, %v1423
    %v1442 = vadd.f32 %v1441, %v1425
    %v1443 = vadd.f32 %v1442, %v1427
    %v1444 = vadd.f32 %v1398, %v1400
    %v1445 = vadd.f32 %v1444, %v1402
    %v1446 = vadd.f32 %v1445, %v1404
    %v1447 = vadd.f32 %v1446, %v1406
    %v1448 = vadd.f32 %v1447, %v1408
    %v1449 = vadd.f32 %v1448, %v1410
    %v1450 = vadd.f32 %v1449, %v1412
    %v1451 = vadd.f32 %v1450, %v1414
    %v1452 = vadd.f32 %v1451, %v1416
    %v1453 = vadd.f32 %v1452, %v1418
    %v1454 = vadd.f32 %v1453, %v1420
    %v1455 = vadd.f32 %v1454, %v1422
    %v1456 = vadd.f32 %v1455, %v1424
    %v1457 = vadd.f32 %v1456, %v1426
    %v1458 = vadd.f32 %v1457, %v1428
    %v1459 = vmul.f32 %v1443, %v1297
    %v1460 = vmul.f32 %v1458, %v1298
    %v1461 = vadd.f32 %v1459, %v1460
    %v1462 = vrot.slane %v1461, 4
    %v1463 = vadd.f32 %v1461, %v1462
    %v1464 = vrot.slane %v1463, 2
    %v1465 = vadd.f32 %v1463, %v1464
    %v1466 = vrot.slane %v1465, 1
    %v1467 = vadd.f32 %v1465, %v1466
    %v1468 = vsub.s32 %v1198, %v1197
    %v1469 = vsub.s32 %v1200, %v1199
    %v1470 = vmul.u32 %v1468, %v1469
    %v1471 = vcvt.s32.f32 %v1470
    %vm1472 = vcmp.le.s32.totalorder %v1198, %v1197
    %vm1473 = vcmp.le.s32.totalorder %v1200, %v1199
    %vm1474 = vmor %vm1472, %vm1473
    %v1475 = vmax.f32 %v1471, 1.0
    %v1476 = vrcp.pop %v1475
    %v1477 = vmul.f32 1.0, %v1476
    %v1478 = vsel %vm1474, 0.0, %v1477
    %v1479 = vmul.f32 %v1467, %v1478
    %1480 = vst [vmem:[#allocation9 + $0x4] sm:$0x1] %v1479
    %s1481 = sadd.s32 %s45, 5
    %s1482 = sld [smem:[#allocation3 + %s1481]]
    %v1483 = vld [vmem:[#allocation7 + $0x5] sm:$0x1]
    %v1484 = vld [vmem:[%s51 + $0x5] sm:$0x1]
    %v1485 = vld [vmem:[%s53 + $0x5] sm:$0x1]
    %v1486 = vld [vmem:[%s55 + $0x5] sm:$0x1]
    %vm1487 = vcmp.le.s32.totalorder %v1483, 0
    %vm1488 = vcmp.le.s32.totalorder %v1483, 1
    %vm1489 = vcmp.le.s32.totalorder %v1483, 2
    %vm1490 = vcmp.le.s32.totalorder %v1483, 3
    %vm1491 = vcmp.le.s32.totalorder %v1483, 4
    %vm1492 = vcmp.le.s32.totalorder %v1483, 5
    %vm1493 = vcmp.le.s32.totalorder %v1483, 6
    %vm1494 = vcmp.le.s32.totalorder %v1483, 7
    %vm1495 = vcmp.le.s32.totalorder %v1483, 8
    %vm1496 = vcmp.le.s32.totalorder %v1483, 9
    %vm1497 = vcmp.le.s32.totalorder %v1483, 10
    %vm1498 = vcmp.le.s32.totalorder %v1483, 11
    %vm1499 = vcmp.le.s32.totalorder %v1483, 12
    %vm1500 = vcmp.le.s32.totalorder %v1483, 13
    %vm1501 = vcmp.le.s32.totalorder %v1483, 14
    %vm1502 = vcmp.le.s32.totalorder %v1483, 15
    %vm1503 = vcmp.gt.s32.totalorder %v1484, 0
    %vm1504 = vcmp.gt.s32.totalorder %v1484, 1
    %vm1505 = vcmp.gt.s32.totalorder %v1484, 2
    %vm1506 = vcmp.gt.s32.totalorder %v1484, 3
    %vm1507 = vcmp.gt.s32.totalorder %v1484, 4
    %vm1508 = vcmp.gt.s32.totalorder %v1484, 5
    %vm1509 = vcmp.gt.s32.totalorder %v1484, 6
    %vm1510 = vcmp.gt.s32.totalorder %v1484, 7
    %vm1511 = vcmp.gt.s32.totalorder %v1484, 8
    %vm1512 = vcmp.gt.s32.totalorder %v1484, 9
    %vm1513 = vcmp.gt.s32.totalorder %v1484, 10
    %vm1514 = vcmp.gt.s32.totalorder %v1484, 11
    %vm1515 = vcmp.gt.s32.totalorder %v1484, 12
    %vm1516 = vcmp.gt.s32.totalorder %v1484, 13
    %vm1517 = vcmp.gt.s32.totalorder %v1484, 14
    %vm1518 = vcmp.gt.s32.totalorder %v1484, 15
    %vm1519 = vmand %vm1487, %vm1503
    %vm1520 = vmand %vm1488, %vm1504
    %vm1521 = vmand %vm1489, %vm1505
    %vm1522 = vmand %vm1490, %vm1506
    %vm1523 = vmand %vm1491, %vm1507
    %vm1524 = vmand %vm1492, %vm1508
    %vm1525 = vmand %vm1493, %vm1509
    %vm1526 = vmand %vm1494, %vm1510
    %vm1527 = vmand %vm1495, %vm1511
    %vm1528 = vmand %vm1496, %vm1512
    %vm1529 = vmand %vm1497, %vm1513
    %vm1530 = vmand %vm1498, %vm1514
    %vm1531 = vmand %vm1499, %vm1515
    %vm1532 = vmand %vm1500, %vm1516
    %vm1533 = vmand %vm1501, %vm1517
    %vm1534 = vmand %vm1502, %vm1518
    %v1535 = vsel %vm1519, 1, 0
    %v1536 = vsel %vm1520, 1, 0
    %v1537 = vsel %vm1521, 1, 0
    %v1538 = vsel %vm1522, 1, 0
    %v1539 = vsel %vm1523, 1, 0
    %v1540 = vsel %vm1524, 1, 0
    %v1541 = vsel %vm1525, 1, 0
    %v1542 = vsel %vm1526, 1, 0
    %v1543 = vsel %vm1527, 1, 0
    %v1544 = vsel %vm1528, 1, 0
    %v1545 = vsel %vm1529, 1, 0
    %v1546 = vsel %vm1530, 1, 0
    %v1547 = vsel %vm1531, 1, 0
    %v1548 = vsel %vm1532, 1, 0
    %v1549 = vsel %vm1533, 1, 0
    %v1550 = vsel %vm1534, 1, 0
    %v1551 = vcvt.s32.f32 %v1535
    %v1552 = vcvt.s32.f32 %v1536
    %v1553 = vcvt.s32.f32 %v1537
    %v1554 = vcvt.s32.f32 %v1538
    %v1555 = vcvt.s32.f32 %v1539
    %v1556 = vcvt.s32.f32 %v1540
    %v1557 = vcvt.s32.f32 %v1541
    %v1558 = vcvt.s32.f32 %v1542
    %v1559 = vcvt.s32.f32 %v1543
    %v1560 = vcvt.s32.f32 %v1544
    %v1561 = vcvt.s32.f32 %v1545
    %v1562 = vcvt.s32.f32 %v1546
    %v1563 = vcvt.s32.f32 %v1547
    %v1564 = vcvt.s32.f32 %v1548
    %v1565 = vcvt.s32.f32 %v1549
    %v1566 = vcvt.s32.f32 %v1550
    %v1567 = vlaneseq
    %v1568 = vshrl.u32 %v1567, 7
    %v1569 = vsub.s32 0, %v1568
    %v1570 = vrot.slane %v1485, %v1569
    %vm1571 = vcmp.ge.s32.totalorder %v47, %v1570
    %vm1572 = vcmp.ge.s32.totalorder %v48, %v1570
    %v1573 = vlaneseq
    %v1574 = vshrl.u32 %v1573, 7
    %v1575 = vsub.s32 0, %v1574
    %v1576 = vrot.slane %v1486, %v1575
    %vm1577 = vcmp.lt.s32.totalorder %v47, %v1576
    %vm1578 = vcmp.lt.s32.totalorder %v48, %v1576
    %vm1579 = vmand %vm1571, %vm1577
    %vm1580 = vmand %vm1572, %vm1578
    %v1581 = vsel %vm1579, 1, 0
    %v1582 = vsel %vm1580, 1, 0
    %v1583 = vcvt.s32.f32 %v1581
    %v1584 = vcvt.s32.f32 %v1582
    %s1585 = smul.u32 %s1482, 256
    %s1586 = scalar_lea.vmem [#allocation4], %s1585
    %v1587 = vld [vmem:[%s1586] sm:$0xff]
    %v1588 = vld [vmem:[%s1586 + $0x8] sm:$0xff]
    %v1589 = vld [vmem:[%s1586 + $0x10] sm:$0xff]
    %v1590 = vld [vmem:[%s1586 + $0x18] sm:$0xff]
    %v1591 = vld [vmem:[%s1586 + $0x20] sm:$0xff]
    %v1592 = vld [vmem:[%s1586 + $0x28] sm:$0xff]
    %v1593 = vld [vmem:[%s1586 + $0x30] sm:$0xff]
    %v1594 = vld [vmem:[%s1586 + $0x38] sm:$0xff]
    %v1595 = vld [vmem:[%s1586 + $0x40] sm:$0xff]
    %v1596 = vld [vmem:[%s1586 + $0x48] sm:$0xff]
    %v1597 = vld [vmem:[%s1586 + $0x50] sm:$0xff]
    %v1598 = vld [vmem:[%s1586 + $0x58] sm:$0xff]
    %v1599 = vld [vmem:[%s1586 + $0x60] sm:$0xff]
    %v1600 = vld [vmem:[%s1586 + $0x68] sm:$0xff]
    %v1601 = vld [vmem:[%s1586 + $0x70] sm:$0xff]
    %v1602 = vld [vmem:[%s1586 + $0x78] sm:$0xff]
    %v1603 = vld [vmem:[%s1586 + $0x80] sm:$0xff]
    %v1604 = vld [vmem:[%s1586 + $0x88] sm:$0xff]
    %v1605 = vld [vmem:[%s1586 + $0x90] sm:$0xff]
    %v1606 = vld [vmem:[%s1586 + $0x98] sm:$0xff]
    %v1607 = vld [vmem:[%s1586 + $0xa0] sm:$0xff]
    %v1608 = vld [vmem:[%s1586 + $0xa8] sm:$0xff]
    %v1609 = vld [vmem:[%s1586 + $0xb0] sm:$0xff]
    %v1610 = vld [vmem:[%s1586 + $0xb8] sm:$0xff]
    %v1611 = vld [vmem:[%s1586 + $0xc0] sm:$0xff]
    %v1612 = vld [vmem:[%s1586 + $0xc8] sm:$0xff]
    %v1613 = vld [vmem:[%s1586 + $0xd0] sm:$0xff]
    %v1614 = vld [vmem:[%s1586 + $0xd8] sm:$0xff]
    %v1615 = vld [vmem:[%s1586 + $0xe0] sm:$0xff]
    %v1616 = vld [vmem:[%s1586 + $0xe8] sm:$0xff]
    %v1617 = vld [vmem:[%s1586 + $0xf0] sm:$0xff]
    %v1618 = vld [vmem:[%s1586 + $0xf8] sm:$0xff]
    %v1619 = vlaneseq
    %v1620 = vshrl.u32 %v1619, 7
    %v1621 = vsub.s32 0, %v1620
    %v1622 = vrot.slane %v1551, %v1621
    %v1623 = vlaneseq
    %v1624 = vshrl.u32 %v1623, 7
    %v1625 = vsub.s32 0, %v1624
    %v1626 = vrot.slane %v1552, %v1625
    %v1627 = vlaneseq
    %v1628 = vshrl.u32 %v1627, 7
    %v1629 = vsub.s32 0, %v1628
    %v1630 = vrot.slane %v1553, %v1629
    %v1631 = vlaneseq
    %v1632 = vshrl.u32 %v1631, 7
    %v1633 = vsub.s32 0, %v1632
    %v1634 = vrot.slane %v1554, %v1633
    %v1635 = vlaneseq
    %v1636 = vshrl.u32 %v1635, 7
    %v1637 = vsub.s32 0, %v1636
    %v1638 = vrot.slane %v1555, %v1637
    %v1639 = vlaneseq
    %v1640 = vshrl.u32 %v1639, 7
    %v1641 = vsub.s32 0, %v1640
    %v1642 = vrot.slane %v1556, %v1641
    %v1643 = vlaneseq
    %v1644 = vshrl.u32 %v1643, 7
    %v1645 = vsub.s32 0, %v1644
    %v1646 = vrot.slane %v1557, %v1645
    %v1647 = vlaneseq
    %v1648 = vshrl.u32 %v1647, 7
    %v1649 = vsub.s32 0, %v1648
    %v1650 = vrot.slane %v1558, %v1649
    %v1651 = vlaneseq
    %v1652 = vshrl.u32 %v1651, 7
    %v1653 = vsub.s32 0, %v1652
    %v1654 = vrot.slane %v1559, %v1653
    %v1655 = vlaneseq
    %v1656 = vshrl.u32 %v1655, 7
    %v1657 = vsub.s32 0, %v1656
    %v1658 = vrot.slane %v1560, %v1657
    %v1659 = vlaneseq
    %v1660 = vshrl.u32 %v1659, 7
    %v1661 = vsub.s32 0, %v1660
    %v1662 = vrot.slane %v1561, %v1661
    %v1663 = vlaneseq
    %v1664 = vshrl.u32 %v1663, 7
    %v1665 = vsub.s32 0, %v1664
    %v1666 = vrot.slane %v1562, %v1665
    %v1667 = vlaneseq
    %v1668 = vshrl.u32 %v1667, 7
    %v1669 = vsub.s32 0, %v1668
    %v1670 = vrot.slane %v1563, %v1669
    %v1671 = vlaneseq
    %v1672 = vshrl.u32 %v1671, 7
    %v1673 = vsub.s32 0, %v1672
    %v1674 = vrot.slane %v1564, %v1673
    %v1675 = vlaneseq
    %v1676 = vshrl.u32 %v1675, 7
    %v1677 = vsub.s32 0, %v1676
    %v1678 = vrot.slane %v1565, %v1677
    %v1679 = vlaneseq
    %v1680 = vshrl.u32 %v1679, 7
    %v1681 = vsub.s32 0, %v1680
    %v1682 = vrot.slane %v1566, %v1681
    %v1683 = vmul.f32 %v1587, %v1622
    %v1684 = vmul.f32 %v1588, %v1622
    %v1685 = vmul.f32 %v1589, %v1626
    %v1686 = vmul.f32 %v1590, %v1626
    %v1687 = vmul.f32 %v1591, %v1630
    %v1688 = vmul.f32 %v1592, %v1630
    %v1689 = vmul.f32 %v1593, %v1634
    %v1690 = vmul.f32 %v1594, %v1634
    %v1691 = vmul.f32 %v1595, %v1638
    %v1692 = vmul.f32 %v1596, %v1638
    %v1693 = vmul.f32 %v1597, %v1642
    %v1694 = vmul.f32 %v1598, %v1642
    %v1695 = vmul.f32 %v1599, %v1646
    %v1696 = vmul.f32 %v1600, %v1646
    %v1697 = vmul.f32 %v1601, %v1650
    %v1698 = vmul.f32 %v1602, %v1650
    %v1699 = vmul.f32 %v1603, %v1654
    %v1700 = vmul.f32 %v1604, %v1654
    %v1701 = vmul.f32 %v1605, %v1658
    %v1702 = vmul.f32 %v1606, %v1658
    %v1703 = vmul.f32 %v1607, %v1662
    %v1704 = vmul.f32 %v1608, %v1662
    %v1705 = vmul.f32 %v1609, %v1666
    %v1706 = vmul.f32 %v1610, %v1666
    %v1707 = vmul.f32 %v1611, %v1670
    %v1708 = vmul.f32 %v1612, %v1670
    %v1709 = vmul.f32 %v1613, %v1674
    %v1710 = vmul.f32 %v1614, %v1674
    %v1711 = vmul.f32 %v1615, %v1678
    %v1712 = vmul.f32 %v1616, %v1678
    %v1713 = vmul.f32 %v1617, %v1682
    %v1714 = vmul.f32 %v1618, %v1682
    %v1715 = vadd.f32 %v1683, %v1685
    %v1716 = vadd.f32 %v1715, %v1687
    %v1717 = vadd.f32 %v1716, %v1689
    %v1718 = vadd.f32 %v1717, %v1691
    %v1719 = vadd.f32 %v1718, %v1693
    %v1720 = vadd.f32 %v1719, %v1695
    %v1721 = vadd.f32 %v1720, %v1697
    %v1722 = vadd.f32 %v1721, %v1699
    %v1723 = vadd.f32 %v1722, %v1701
    %v1724 = vadd.f32 %v1723, %v1703
    %v1725 = vadd.f32 %v1724, %v1705
    %v1726 = vadd.f32 %v1725, %v1707
    %v1727 = vadd.f32 %v1726, %v1709
    %v1728 = vadd.f32 %v1727, %v1711
    %v1729 = vadd.f32 %v1728, %v1713
    %v1730 = vadd.f32 %v1684, %v1686
    %v1731 = vadd.f32 %v1730, %v1688
    %v1732 = vadd.f32 %v1731, %v1690
    %v1733 = vadd.f32 %v1732, %v1692
    %v1734 = vadd.f32 %v1733, %v1694
    %v1735 = vadd.f32 %v1734, %v1696
    %v1736 = vadd.f32 %v1735, %v1698
    %v1737 = vadd.f32 %v1736, %v1700
    %v1738 = vadd.f32 %v1737, %v1702
    %v1739 = vadd.f32 %v1738, %v1704
    %v1740 = vadd.f32 %v1739, %v1706
    %v1741 = vadd.f32 %v1740, %v1708
    %v1742 = vadd.f32 %v1741, %v1710
    %v1743 = vadd.f32 %v1742, %v1712
    %v1744 = vadd.f32 %v1743, %v1714
    %v1745 = vmul.f32 %v1729, %v1583
    %v1746 = vmul.f32 %v1744, %v1584
    %v1747 = vadd.f32 %v1745, %v1746
    %v1748 = vrot.slane %v1747, 4
    %v1749 = vadd.f32 %v1747, %v1748
    %v1750 = vrot.slane %v1749, 2
    %v1751 = vadd.f32 %v1749, %v1750
    %v1752 = vrot.slane %v1751, 1
    %v1753 = vadd.f32 %v1751, %v1752
    %v1754 = vsub.s32 %v1484, %v1483
    %v1755 = vsub.s32 %v1486, %v1485
    %v1756 = vmul.u32 %v1754, %v1755
    %v1757 = vcvt.s32.f32 %v1756
    %vm1758 = vcmp.le.s32.totalorder %v1484, %v1483
    %vm1759 = vcmp.le.s32.totalorder %v1486, %v1485
    %vm1760 = vmor %vm1758, %vm1759
    %v1761 = vmax.f32 %v1757, 1.0
    %v1762 = vrcp.pop %v1761
    %v1763 = vmul.f32 1.0, %v1762
    %v1764 = vsel %vm1760, 0.0, %v1763
    %v1765 = vmul.f32 %v1753, %v1764
    %1766 = vst [vmem:[#allocation9 + $0x5] sm:$0x1] %v1765
    %s1767 = sadd.s32 %s45, 6
    %s1768 = sld [smem:[#allocation3 + %s1767]]
    %v1769 = vld [vmem:[#allocation7 + $0x6] sm:$0x1]
    %v1770 = vld [vmem:[%s51 + $0x6] sm:$0x1]
    %v1771 = vld [vmem:[%s53 + $0x6] sm:$0x1]
    %v1772 = vld [vmem:[%s55 + $0x6] sm:$0x1]
    %vm1773 = vcmp.le.s32.totalorder %v1769, 0
    %vm1774 = vcmp.le.s32.totalorder %v1769, 1
    %vm1775 = vcmp.le.s32.totalorder %v1769, 2
    %vm1776 = vcmp.le.s32.totalorder %v1769, 3
    %vm1777 = vcmp.le.s32.totalorder %v1769, 4
    %vm1778 = vcmp.le.s32.totalorder %v1769, 5
    %vm1779 = vcmp.le.s32.totalorder %v1769, 6
    %vm1780 = vcmp.le.s32.totalorder %v1769, 7
    %vm1781 = vcmp.le.s32.totalorder %v1769, 8
    %vm1782 = vcmp.le.s32.totalorder %v1769, 9
    %vm1783 = vcmp.le.s32.totalorder %v1769, 10
    %vm1784 = vcmp.le.s32.totalorder %v1769, 11
    %vm1785 = vcmp.le.s32.totalorder %v1769, 12
    %vm1786 = vcmp.le.s32.totalorder %v1769, 13
    %vm1787 = vcmp.le.s32.totalorder %v1769, 14
    %vm1788 = vcmp.le.s32.totalorder %v1769, 15
    %vm1789 = vcmp.gt.s32.totalorder %v1770, 0
    %vm1790 = vcmp.gt.s32.totalorder %v1770, 1
    %vm1791 = vcmp.gt.s32.totalorder %v1770, 2
    %vm1792 = vcmp.gt.s32.totalorder %v1770, 3
    %vm1793 = vcmp.gt.s32.totalorder %v1770, 4
    %vm1794 = vcmp.gt.s32.totalorder %v1770, 5
    %vm1795 = vcmp.gt.s32.totalorder %v1770, 6
    %vm1796 = vcmp.gt.s32.totalorder %v1770, 7
    %vm1797 = vcmp.gt.s32.totalorder %v1770, 8
    %vm1798 = vcmp.gt.s32.totalorder %v1770, 9
    %vm1799 = vcmp.gt.s32.totalorder %v1770, 10
    %vm1800 = vcmp.gt.s32.totalorder %v1770, 11
    %vm1801 = vcmp.gt.s32.totalorder %v1770, 12
    %vm1802 = vcmp.gt.s32.totalorder %v1770, 13
    %vm1803 = vcmp.gt.s32.totalorder %v1770, 14
    %vm1804 = vcmp.gt.s32.totalorder %v1770, 15
    %vm1805 = vmand %vm1773, %vm1789
    %vm1806 = vmand %vm1774, %vm1790
    %vm1807 = vmand %vm1775, %vm1791
    %vm1808 = vmand %vm1776, %vm1792
    %vm1809 = vmand %vm1777, %vm1793
    %vm1810 = vmand %vm1778, %vm1794
    %vm1811 = vmand %vm1779, %vm1795
    %vm1812 = vmand %vm1780, %vm1796
    %vm1813 = vmand %vm1781, %vm1797
    %vm1814 = vmand %vm1782, %vm1798
    %vm1815 = vmand %vm1783, %vm1799
    %vm1816 = vmand %vm1784, %vm1800
    %vm1817 = vmand %vm1785, %vm1801
    %vm1818 = vmand %vm1786, %vm1802
    %vm1819 = vmand %vm1787, %vm1803
    %vm1820 = vmand %vm1788, %vm1804
    %v1821 = vsel %vm1805, 1, 0
    %v1822 = vsel %vm1806, 1, 0
    %v1823 = vsel %vm1807, 1, 0
    %v1824 = vsel %vm1808, 1, 0
    %v1825 = vsel %vm1809, 1, 0
    %v1826 = vsel %vm1810, 1, 0
    %v1827 = vsel %vm1811, 1, 0
    %v1828 = vsel %vm1812, 1, 0
    %v1829 = vsel %vm1813, 1, 0
    %v1830 = vsel %vm1814, 1, 0
    %v1831 = vsel %vm1815, 1, 0
    %v1832 = vsel %vm1816, 1, 0
    %v1833 = vsel %vm1817, 1, 0
    %v1834 = vsel %vm1818, 1, 0
    %v1835 = vsel %vm1819, 1, 0
    %v1836 = vsel %vm1820, 1, 0
    %v1837 = vcvt.s32.f32 %v1821
    %v1838 = vcvt.s32.f32 %v1822
    %v1839 = vcvt.s32.f32 %v1823
    %v1840 = vcvt.s32.f32 %v1824
    %v1841 = vcvt.s32.f32 %v1825
    %v1842 = vcvt.s32.f32 %v1826
    %v1843 = vcvt.s32.f32 %v1827
    %v1844 = vcvt.s32.f32 %v1828
    %v1845 = vcvt.s32.f32 %v1829
    %v1846 = vcvt.s32.f32 %v1830
    %v1847 = vcvt.s32.f32 %v1831
    %v1848 = vcvt.s32.f32 %v1832
    %v1849 = vcvt.s32.f32 %v1833
    %v1850 = vcvt.s32.f32 %v1834
    %v1851 = vcvt.s32.f32 %v1835
    %v1852 = vcvt.s32.f32 %v1836
    %v1853 = vlaneseq
    %v1854 = vshrl.u32 %v1853, 7
    %v1855 = vsub.s32 0, %v1854
    %v1856 = vrot.slane %v1771, %v1855
    %vm1857 = vcmp.ge.s32.totalorder %v47, %v1856
    %vm1858 = vcmp.ge.s32.totalorder %v48, %v1856
    %v1859 = vlaneseq
    %v1860 = vshrl.u32 %v1859, 7
    %v1861 = vsub.s32 0, %v1860
    %v1862 = vrot.slane %v1772, %v1861
    %vm1863 = vcmp.lt.s32.totalorder %v47, %v1862
    %vm1864 = vcmp.lt.s32.totalorder %v48, %v1862
    %vm1865 = vmand %vm1857, %vm1863
    %vm1866 = vmand %vm1858, %vm1864
    %v1867 = vsel %vm1865, 1, 0
    %v1868 = vsel %vm1866, 1, 0
    %v1869 = vcvt.s32.f32 %v1867
    %v1870 = vcvt.s32.f32 %v1868
    %s1871 = smul.u32 %s1768, 256
    %s1872 = scalar_lea.vmem [#allocation4], %s1871
    %v1873 = vld [vmem:[%s1872] sm:$0xff]
    %v1874 = vld [vmem:[%s1872 + $0x8] sm:$0xff]
    %v1875 = vld [vmem:[%s1872 + $0x10] sm:$0xff]
    %v1876 = vld [vmem:[%s1872 + $0x18] sm:$0xff]
    %v1877 = vld [vmem:[%s1872 + $0x20] sm:$0xff]
    %v1878 = vld [vmem:[%s1872 + $0x28] sm:$0xff]
    %v1879 = vld [vmem:[%s1872 + $0x30] sm:$0xff]
    %v1880 = vld [vmem:[%s1872 + $0x38] sm:$0xff]
    %v1881 = vld [vmem:[%s1872 + $0x40] sm:$0xff]
    %v1882 = vld [vmem:[%s1872 + $0x48] sm:$0xff]
    %v1883 = vld [vmem:[%s1872 + $0x50] sm:$0xff]
    %v1884 = vld [vmem:[%s1872 + $0x58] sm:$0xff]
    %v1885 = vld [vmem:[%s1872 + $0x60] sm:$0xff]
    %v1886 = vld [vmem:[%s1872 + $0x68] sm:$0xff]
    %v1887 = vld [vmem:[%s1872 + $0x70] sm:$0xff]
    %v1888 = vld [vmem:[%s1872 + $0x78] sm:$0xff]
    %v1889 = vld [vmem:[%s1872 + $0x80] sm:$0xff]
    %v1890 = vld [vmem:[%s1872 + $0x88] sm:$0xff]
    %v1891 = vld [vmem:[%s1872 + $0x90] sm:$0xff]
    %v1892 = vld [vmem:[%s1872 + $0x98] sm:$0xff]
    %v1893 = vld [vmem:[%s1872 + $0xa0] sm:$0xff]
    %v1894 = vld [vmem:[%s1872 + $0xa8] sm:$0xff]
    %v1895 = vld [vmem:[%s1872 + $0xb0] sm:$0xff]
    %v1896 = vld [vmem:[%s1872 + $0xb8] sm:$0xff]
    %v1897 = vld [vmem:[%s1872 + $0xc0] sm:$0xff]
    %v1898 = vld [vmem:[%s1872 + $0xc8] sm:$0xff]
    %v1899 = vld [vmem:[%s1872 + $0xd0] sm:$0xff]
    %v1900 = vld [vmem:[%s1872 + $0xd8] sm:$0xff]
    %v1901 = vld [vmem:[%s1872 + $0xe0] sm:$0xff]
    %v1902 = vld [vmem:[%s1872 + $0xe8] sm:$0xff]
    %v1903 = vld [vmem:[%s1872 + $0xf0] sm:$0xff]
    %v1904 = vld [vmem:[%s1872 + $0xf8] sm:$0xff]
    %v1905 = vlaneseq
    %v1906 = vshrl.u32 %v1905, 7
    %v1907 = vsub.s32 0, %v1906
    %v1908 = vrot.slane %v1837, %v1907
    %v1909 = vlaneseq
    %v1910 = vshrl.u32 %v1909, 7
    %v1911 = vsub.s32 0, %v1910
    %v1912 = vrot.slane %v1838, %v1911
    %v1913 = vlaneseq
    %v1914 = vshrl.u32 %v1913, 7
    %v1915 = vsub.s32 0, %v1914
    %v1916 = vrot.slane %v1839, %v1915
    %v1917 = vlaneseq
    %v1918 = vshrl.u32 %v1917, 7
    %v1919 = vsub.s32 0, %v1918
    %v1920 = vrot.slane %v1840, %v1919
    %v1921 = vlaneseq
    %v1922 = vshrl.u32 %v1921, 7
    %v1923 = vsub.s32 0, %v1922
    %v1924 = vrot.slane %v1841, %v1923
    %v1925 = vlaneseq
    %v1926 = vshrl.u32 %v1925, 7
    %v1927 = vsub.s32 0, %v1926
    %v1928 = vrot.slane %v1842, %v1927
    %v1929 = vlaneseq
    %v1930 = vshrl.u32 %v1929, 7
    %v1931 = vsub.s32 0, %v1930
    %v1932 = vrot.slane %v1843, %v1931
    %v1933 = vlaneseq
    %v1934 = vshrl.u32 %v1933, 7
    %v1935 = vsub.s32 0, %v1934
    %v1936 = vrot.slane %v1844, %v1935
    %v1937 = vlaneseq
    %v1938 = vshrl.u32 %v1937, 7
    %v1939 = vsub.s32 0, %v1938
    %v1940 = vrot.slane %v1845, %v1939
    %v1941 = vlaneseq
    %v1942 = vshrl.u32 %v1941, 7
    %v1943 = vsub.s32 0, %v1942
    %v1944 = vrot.slane %v1846, %v1943
    %v1945 = vlaneseq
    %v1946 = vshrl.u32 %v1945, 7
    %v1947 = vsub.s32 0, %v1946
    %v1948 = vrot.slane %v1847, %v1947
    %v1949 = vlaneseq
    %v1950 = vshrl.u32 %v1949, 7
    %v1951 = vsub.s32 0, %v1950
    %v1952 = vrot.slane %v1848, %v1951
    %v1953 = vlaneseq
    %v1954 = vshrl.u32 %v1953, 7
    %v1955 = vsub.s32 0, %v1954
    %v1956 = vrot.slane %v1849, %v1955
    %v1957 = vlaneseq
    %v1958 = vshrl.u32 %v1957, 7
    %v1959 = vsub.s32 0, %v1958
    %v1960 = vrot.slane %v1850, %v1959
    %v1961 = vlaneseq
    %v1962 = vshrl.u32 %v1961, 7
    %v1963 = vsub.s32 0, %v1962
    %v1964 = vrot.slane %v1851, %v1963
    %v1965 = vlaneseq
    %v1966 = vshrl.u32 %v1965, 7
    %v1967 = vsub.s32 0, %v1966
    %v1968 = vrot.slane %v1852, %v1967
    %v1969 = vmul.f32 %v1873, %v1908
    %v1970 = vmul.f32 %v1874, %v1908
    %v1971 = vmul.f32 %v1875, %v1912
    %v1972 = vmul.f32 %v1876, %v1912
    %v1973 = vmul.f32 %v1877, %v1916
    %v1974 = vmul.f32 %v1878, %v1916
    %v1975 = vmul.f32 %v1879, %v1920
    %v1976 = vmul.f32 %v1880, %v1920
    %v1977 = vmul.f32 %v1881, %v1924
    %v1978 = vmul.f32 %v1882, %v1924
    %v1979 = vmul.f32 %v1883, %v1928
    %v1980 = vmul.f32 %v1884, %v1928
    %v1981 = vmul.f32 %v1885, %v1932
    %v1982 = vmul.f32 %v1886, %v1932
    %v1983 = vmul.f32 %v1887, %v1936
    %v1984 = vmul.f32 %v1888, %v1936
    %v1985 = vmul.f32 %v1889, %v1940
    %v1986 = vmul.f32 %v1890, %v1940
    %v1987 = vmul.f32 %v1891, %v1944
    %v1988 = vmul.f32 %v1892, %v1944
    %v1989 = vmul.f32 %v1893, %v1948
    %v1990 = vmul.f32 %v1894, %v1948
    %v1991 = vmul.f32 %v1895, %v1952
    %v1992 = vmul.f32 %v1896, %v1952
    %v1993 = vmul.f32 %v1897, %v1956
    %v1994 = vmul.f32 %v1898, %v1956
    %v1995 = vmul.f32 %v1899, %v1960
    %v1996 = vmul.f32 %v1900, %v1960
    %v1997 = vmul.f32 %v1901, %v1964
    %v1998 = vmul.f32 %v1902, %v1964
    %v1999 = vmul.f32 %v1903, %v1968
    %v2000 = vmul.f32 %v1904, %v1968
    %v2001 = vadd.f32 %v1969, %v1971
    %v2002 = vadd.f32 %v2001, %v1973
    %v2003 = vadd.f32 %v2002, %v1975
    %v2004 = vadd.f32 %v2003, %v1977
    %v2005 = vadd.f32 %v2004, %v1979
    %v2006 = vadd.f32 %v2005, %v1981
    %v2007 = vadd.f32 %v2006, %v1983
    %v2008 = vadd.f32 %v2007, %v1985
    %v2009 = vadd.f32 %v2008, %v1987
    %v2010 = vadd.f32 %v2009, %v1989
    %v2011 = vadd.f32 %v2010, %v1991
    %v2012 = vadd.f32 %v2011, %v1993
    %v2013 = vadd.f32 %v2012, %v1995
    %v2014 = vadd.f32 %v2013, %v1997
    %v2015 = vadd.f32 %v2014, %v1999
    %v2016 = vadd.f32 %v1970, %v1972
    %v2017 = vadd.f32 %v2016, %v1974
    %v2018 = vadd.f32 %v2017, %v1976
    %v2019 = vadd.f32 %v2018, %v1978
    %v2020 = vadd.f32 %v2019, %v1980
    %v2021 = vadd.f32 %v2020, %v1982
    %v2022 = vadd.f32 %v2021, %v1984
    %v2023 = vadd.f32 %v2022, %v1986
    %v2024 = vadd.f32 %v2023, %v1988
    %v2025 = vadd.f32 %v2024, %v1990
    %v2026 = vadd.f32 %v2025, %v1992
    %v2027 = vadd.f32 %v2026, %v1994
    %v2028 = vadd.f32 %v2027, %v1996
    %v2029 = vadd.f32 %v2028, %v1998
    %v2030 = vadd.f32 %v2029, %v2000
    %v2031 = vmul.f32 %v2015, %v1869
    %v2032 = vmul.f32 %v2030, %v1870
    %v2033 = vadd.f32 %v2031, %v2032
    %v2034 = vrot.slane %v2033, 4
    %v2035 = vadd.f32 %v2033, %v2034
    %v2036 = vrot.slane %v2035, 2
    %v2037 = vadd.f32 %v2035, %v2036
    %v2038 = vrot.slane %v2037, 1
    %v2039 = vadd.f32 %v2037, %v2038
    %v2040 = vsub.s32 %v1770, %v1769
    %v2041 = vsub.s32 %v1772, %v1771
    %v2042 = vmul.u32 %v2040, %v2041
    %v2043 = vcvt.s32.f32 %v2042
    %vm2044 = vcmp.le.s32.totalorder %v1770, %v1769
    %vm2045 = vcmp.le.s32.totalorder %v1772, %v1771
    %vm2046 = vmor %vm2044, %vm2045
    %v2047 = vmax.f32 %v2043, 1.0
    %v2048 = vrcp.pop %v2047
    %v2049 = vmul.f32 1.0, %v2048
    %v2050 = vsel %vm2046, 0.0, %v2049
    %v2051 = vmul.f32 %v2039, %v2050
    %2052 = vst [vmem:[#allocation9 + $0x6] sm:$0x1] %v2051
    %s2053 = sadd.s32 %s45, 7
    %s2054 = sld [smem:[#allocation3 + %s2053]]
    %v2055 = vld [vmem:[#allocation7 + $0x7] sm:$0x1]
    %v2056 = vld [vmem:[%s51 + $0x7] sm:$0x1]
    %v2057 = vld [vmem:[%s53 + $0x7] sm:$0x1]
    %v2058 = vld [vmem:[%s55 + $0x7] sm:$0x1]
    %vm2059 = vcmp.le.s32.totalorder %v2055, 0
    %vm2060 = vcmp.le.s32.totalorder %v2055, 1
    %vm2061 = vcmp.le.s32.totalorder %v2055, 2
    %vm2062 = vcmp.le.s32.totalorder %v2055, 3
    %vm2063 = vcmp.le.s32.totalorder %v2055, 4
    %vm2064 = vcmp.le.s32.totalorder %v2055, 5
    %vm2065 = vcmp.le.s32.totalorder %v2055, 6
    %vm2066 = vcmp.le.s32.totalorder %v2055, 7
    %vm2067 = vcmp.le.s32.totalorder %v2055, 8
    %vm2068 = vcmp.le.s32.totalorder %v2055, 9
    %vm2069 = vcmp.le.s32.totalorder %v2055, 10
    %vm2070 = vcmp.le.s32.totalorder %v2055, 11
    %vm2071 = vcmp.le.s32.totalorder %v2055, 12
    %vm2072 = vcmp.le.s32.totalorder %v2055, 13
    %vm2073 = vcmp.le.s32.totalorder %v2055, 14
    %vm2074 = vcmp.le.s32.totalorder %v2055, 15
    %vm2075 = vcmp.gt.s32.totalorder %v2056, 0
    %vm2076 = vcmp.gt.s32.totalorder %v2056, 1
    %vm2077 = vcmp.gt.s32.totalorder %v2056, 2
    %vm2078 = vcmp.gt.s32.totalorder %v2056, 3
    %vm2079 = vcmp.gt.s32.totalorder %v2056, 4
    %vm2080 = vcmp.gt.s32.totalorder %v2056, 5
    %vm2081 = vcmp.gt.s32.totalorder %v2056, 6
    %vm2082 = vcmp.gt.s32.totalorder %v2056, 7
    %vm2083 = vcmp.gt.s32.totalorder %v2056, 8
    %vm2084 = vcmp.gt.s32.totalorder %v2056, 9
    %vm2085 = vcmp.gt.s32.totalorder %v2056, 10
    %vm2086 = vcmp.gt.s32.totalorder %v2056, 11
    %vm2087 = vcmp.gt.s32.totalorder %v2056, 12
    %vm2088 = vcmp.gt.s32.totalorder %v2056, 13
    %vm2089 = vcmp.gt.s32.totalorder %v2056, 14
    %vm2090 = vcmp.gt.s32.totalorder %v2056, 15
    %vm2091 = vmand %vm2059, %vm2075
    %vm2092 = vmand %vm2060, %vm2076
    %vm2093 = vmand %vm2061, %vm2077
    %vm2094 = vmand %vm2062, %vm2078
    %vm2095 = vmand %vm2063, %vm2079
    %vm2096 = vmand %vm2064, %vm2080
    %vm2097 = vmand %vm2065, %vm2081
    %vm2098 = vmand %vm2066, %vm2082
    %vm2099 = vmand %vm2067, %vm2083
    %vm2100 = vmand %vm2068, %vm2084
    %vm2101 = vmand %vm2069, %vm2085
    %vm2102 = vmand %vm2070, %vm2086
    %vm2103 = vmand %vm2071, %vm2087
    %vm2104 = vmand %vm2072, %vm2088
    %vm2105 = vmand %vm2073, %vm2089
    %vm2106 = vmand %vm2074, %vm2090
    %v2107 = vsel %vm2091, 1, 0
    %v2108 = vsel %vm2092, 1, 0
    %v2109 = vsel %vm2093, 1, 0
    %v2110 = vsel %vm2094, 1, 0
    %v2111 = vsel %vm2095, 1, 0
    %v2112 = vsel %vm2096, 1, 0
    %v2113 = vsel %vm2097, 1, 0
    %v2114 = vsel %vm2098, 1, 0
    %v2115 = vsel %vm2099, 1, 0
    %v2116 = vsel %vm2100, 1, 0
    %v2117 = vsel %vm2101, 1, 0
    %v2118 = vsel %vm2102, 1, 0
    %v2119 = vsel %vm2103, 1, 0
    %v2120 = vsel %vm2104, 1, 0
    %v2121 = vsel %vm2105, 1, 0
    %v2122 = vsel %vm2106, 1, 0
    %v2123 = vcvt.s32.f32 %v2107
    %v2124 = vcvt.s32.f32 %v2108
    %v2125 = vcvt.s32.f32 %v2109
    %v2126 = vcvt.s32.f32 %v2110
    %v2127 = vcvt.s32.f32 %v2111
    %v2128 = vcvt.s32.f32 %v2112
    %v2129 = vcvt.s32.f32 %v2113
    %v2130 = vcvt.s32.f32 %v2114
    %v2131 = vcvt.s32.f32 %v2115
    %v2132 = vcvt.s32.f32 %v2116
    %v2133 = vcvt.s32.f32 %v2117
    %v2134 = vcvt.s32.f32 %v2118
    %v2135 = vcvt.s32.f32 %v2119
    %v2136 = vcvt.s32.f32 %v2120
    %v2137 = vcvt.s32.f32 %v2121
    %v2138 = vcvt.s32.f32 %v2122
    %v2139 = vlaneseq
    %v2140 = vshrl.u32 %v2139, 7
    %v2141 = vsub.s32 0, %v2140
    %v2142 = vrot.slane %v2057, %v2141
    %vm2143 = vcmp.ge.s32.totalorder %v47, %v2142
    %vm2144 = vcmp.ge.s32.totalorder %v48, %v2142
    %v2145 = vlaneseq
    %v2146 = vshrl.u32 %v2145, 7
    %v2147 = vsub.s32 0, %v2146
    %v2148 = vrot.slane %v2058, %v2147
    %vm2149 = vcmp.lt.s32.totalorder %v47, %v2148
    %vm2150 = vcmp.lt.s32.totalorder %v48, %v2148
    %vm2151 = vmand %vm2143, %vm2149
    %vm2152 = vmand %vm2144, %vm2150
    %v2153 = vsel %vm2151, 1, 0
    %v2154 = vsel %vm2152, 1, 0
    %v2155 = vcvt.s32.f32 %v2153
    %v2156 = vcvt.s32.f32 %v2154
    %s2157 = smul.u32 %s2054, 256
    %s2158 = scalar_lea.vmem [#allocation4], %s2157
    %v2159 = vld [vmem:[%s2158] sm:$0xff]
    %v2160 = vld [vmem:[%s2158 + $0x8] sm:$0xff]
    %v2161 = vld [vmem:[%s2158 + $0x10] sm:$0xff]
    %v2162 = vld [vmem:[%s2158 + $0x18] sm:$0xff]
    %v2163 = vld [vmem:[%s2158 + $0x20] sm:$0xff]
    %v2164 = vld [vmem:[%s2158 + $0x28] sm:$0xff]
    %v2165 = vld [vmem:[%s2158 + $0x30] sm:$0xff]
    %v2166 = vld [vmem:[%s2158 + $0x38] sm:$0xff]
    %v2167 = vld [vmem:[%s2158 + $0x40] sm:$0xff]
    %v2168 = vld [vmem:[%s2158 + $0x48] sm:$0xff]
    %v2169 = vld [vmem:[%s2158 + $0x50] sm:$0xff]
    %v2170 = vld [vmem:[%s2158 + $0x58] sm:$0xff]
    %v2171 = vld [vmem:[%s2158 + $0x60] sm:$0xff]
    %v2172 = vld [vmem:[%s2158 + $0x68] sm:$0xff]
    %v2173 = vld [vmem:[%s2158 + $0x70] sm:$0xff]
    %v2174 = vld [vmem:[%s2158 + $0x78] sm:$0xff]
    %v2175 = vld [vmem:[%s2158 + $0x80] sm:$0xff]
    %v2176 = vld [vmem:[%s2158 + $0x88] sm:$0xff]
    %v2177 = vld [vmem:[%s2158 + $0x90] sm:$0xff]
    %v2178 = vld [vmem:[%s2158 + $0x98] sm:$0xff]
    %v2179 = vld [vmem:[%s2158 + $0xa0] sm:$0xff]
    %v2180 = vld [vmem:[%s2158 + $0xa8] sm:$0xff]
    %v2181 = vld [vmem:[%s2158 + $0xb0] sm:$0xff]
    %v2182 = vld [vmem:[%s2158 + $0xb8] sm:$0xff]
    %v2183 = vld [vmem:[%s2158 + $0xc0] sm:$0xff]
    %v2184 = vld [vmem:[%s2158 + $0xc8] sm:$0xff]
    %v2185 = vld [vmem:[%s2158 + $0xd0] sm:$0xff]
    %v2186 = vld [vmem:[%s2158 + $0xd8] sm:$0xff]
    %v2187 = vld [vmem:[%s2158 + $0xe0] sm:$0xff]
    %v2188 = vld [vmem:[%s2158 + $0xe8] sm:$0xff]
    %v2189 = vld [vmem:[%s2158 + $0xf0] sm:$0xff]
    %v2190 = vld [vmem:[%s2158 + $0xf8] sm:$0xff]
    %v2191 = vlaneseq
    %v2192 = vshrl.u32 %v2191, 7
    %v2193 = vsub.s32 0, %v2192
    %v2194 = vrot.slane %v2123, %v2193
    %v2195 = vlaneseq
    %v2196 = vshrl.u32 %v2195, 7
    %v2197 = vsub.s32 0, %v2196
    %v2198 = vrot.slane %v2124, %v2197
    %v2199 = vlaneseq
    %v2200 = vshrl.u32 %v2199, 7
    %v2201 = vsub.s32 0, %v2200
    %v2202 = vrot.slane %v2125, %v2201
    %v2203 = vlaneseq
    %v2204 = vshrl.u32 %v2203, 7
    %v2205 = vsub.s32 0, %v2204
    %v2206 = vrot.slane %v2126, %v2205
    %v2207 = vlaneseq
    %v2208 = vshrl.u32 %v2207, 7
    %v2209 = vsub.s32 0, %v2208
    %v2210 = vrot.slane %v2127, %v2209
    %v2211 = vlaneseq
    %v2212 = vshrl.u32 %v2211, 7
    %v2213 = vsub.s32 0, %v2212
    %v2214 = vrot.slane %v2128, %v2213
    %v2215 = vlaneseq
    %v2216 = vshrl.u32 %v2215, 7
    %v2217 = vsub.s32 0, %v2216
    %v2218 = vrot.slane %v2129, %v2217
    %v2219 = vlaneseq
    %v2220 = vshrl.u32 %v2219, 7
    %v2221 = vsub.s32 0, %v2220
    %v2222 = vrot.slane %v2130, %v2221
    %v2223 = vlaneseq
    %v2224 = vshrl.u32 %v2223, 7
    %v2225 = vsub.s32 0, %v2224
    %v2226 = vrot.slane %v2131, %v2225
    %v2227 = vlaneseq
    %v2228 = vshrl.u32 %v2227, 7
    %v2229 = vsub.s32 0, %v2228
    %v2230 = vrot.slane %v2132, %v2229
    %v2231 = vlaneseq
    %v2232 = vshrl.u32 %v2231, 7
    %v2233 = vsub.s32 0, %v2232
    %v2234 = vrot.slane %v2133, %v2233
    %v2235 = vlaneseq
    %v2236 = vshrl.u32 %v2235, 7
    %v2237 = vsub.s32 0, %v2236
    %v2238 = vrot.slane %v2134, %v2237
    %v2239 = vlaneseq
    %v2240 = vshrl.u32 %v2239, 7
    %v2241 = vsub.s32 0, %v2240
    %v2242 = vrot.slane %v2135, %v2241
    %v2243 = vlaneseq
    %v2244 = vshrl.u32 %v2243, 7
    %v2245 = vsub.s32 0, %v2244
    %v2246 = vrot.slane %v2136, %v2245
    %v2247 = vlaneseq
    %v2248 = vshrl.u32 %v2247, 7
    %v2249 = vsub.s32 0, %v2248
    %v2250 = vrot.slane %v2137, %v2249
    %v2251 = vlaneseq
    %v2252 = vshrl.u32 %v2251, 7
    %v2253 = vsub.s32 0, %v2252
    %v2254 = vrot.slane %v2138, %v2253
    %v2255 = vmul.f32 %v2159, %v2194
    %v2256 = vmul.f32 %v2160, %v2194
    %v2257 = vmul.f32 %v2161, %v2198
    %v2258 = vmul.f32 %v2162, %v2198
    %v2259 = vmul.f32 %v2163, %v2202
    %v2260 = vmul.f32 %v2164, %v2202
    %v2261 = vmul.f32 %v2165, %v2206
    %v2262 = vmul.f32 %v2166, %v2206
    %v2263 = vmul.f32 %v2167, %v2210
    %v2264 = vmul.f32 %v2168, %v2210
    %v2265 = vmul.f32 %v2169, %v2214
    %v2266 = vmul.f32 %v2170, %v2214
    %v2267 = vmul.f32 %v2171, %v2218
    %v2268 = vmul.f32 %v2172, %v2218
    %v2269 = vmul.f32 %v2173, %v2222
    %v2270 = vmul.f32 %v2174, %v2222
    %v2271 = vmul.f32 %v2175, %v2226
    %v2272 = vmul.f32 %v2176, %v2226
    %v2273 = vmul.f32 %v2177, %v2230
    %v2274 = vmul.f32 %v2178, %v2230
    %v2275 = vmul.f32 %v2179, %v2234
    %v2276 = vmul.f32 %v2180, %v2234
    %v2277 = vmul.f32 %v2181, %v2238
    %v2278 = vmul.f32 %v2182, %v2238
    %v2279 = vmul.f32 %v2183, %v2242
    %v2280 = vmul.f32 %v2184, %v2242
    %v2281 = vmul.f32 %v2185, %v2246
    %v2282 = vmul.f32 %v2186, %v2246
    %v2283 = vmul.f32 %v2187, %v2250
    %v2284 = vmul.f32 %v2188, %v2250
    %v2285 = vmul.f32 %v2189, %v2254
    %v2286 = vmul.f32 %v2190, %v2254
    %v2287 = vadd.f32 %v2255, %v2257
    %v2288 = vadd.f32 %v2287, %v2259
    %v2289 = vadd.f32 %v2288, %v2261
    %v2290 = vadd.f32 %v2289, %v2263
    %v2291 = vadd.f32 %v2290, %v2265
    %v2292 = vadd.f32 %v2291, %v2267
    %v2293 = vadd.f32 %v2292, %v2269
    %v2294 = vadd.f32 %v2293, %v2271
    %v2295 = vadd.f32 %v2294, %v2273
    %v2296 = vadd.f32 %v2295, %v2275
    %v2297 = vadd.f32 %v2296, %v2277
    %v2298 = vadd.f32 %v2297, %v2279
    %v2299 = vadd.f32 %v2298, %v2281
    %v2300 = vadd.f32 %v2299, %v2283
    %v2301 = vadd.f32 %v2300, %v2285
    %v2302 = vadd.f32 %v2256, %v2258
    %v2303 = vadd.f32 %v2302, %v2260
    %v2304 = vadd.f32 %v2303, %v2262
    %v2305 = vadd.f32 %v2304, %v2264
    %v2306 = vadd.f32 %v2305, %v2266
    %v2307 = vadd.f32 %v2306, %v2268
    %v2308 = vadd.f32 %v2307, %v2270
    %v2309 = vadd.f32 %v2308, %v2272
    %v2310 = vadd.f32 %v2309, %v2274
    %v2311 = vadd.f32 %v2310, %v2276
    %v2312 = vadd.f32 %v2311, %v2278
    %v2313 = vadd.f32 %v2312, %v2280
    %v2314 = vadd.f32 %v2313, %v2282
    %v2315 = vadd.f32 %v2314, %v2284
    %v2316 = vadd.f32 %v2315, %v2286
    %v2317 = vmul.f32 %v2301, %v2155
    %v2318 = vmul.f32 %v2316, %v2156
    %v2319 = vadd.f32 %v2317, %v2318
    %v2320 = vrot.slane %v2319, 4
    %v2321 = vadd.f32 %v2319, %v2320
    %v2322 = vrot.slane %v2321, 2
    %v2323 = vadd.f32 %v2321, %v2322
    %v2324 = vrot.slane %v2323, 1
    %v2325 = vadd.f32 %v2323, %v2324
    %v2326 = vsub.s32 %v2056, %v2055
    %v2327 = vsub.s32 %v2058, %v2057
    %v2328 = vmul.u32 %v2326, %v2327
    %v2329 = vcvt.s32.f32 %v2328
    %vm2330 = vcmp.le.s32.totalorder %v2056, %v2055
    %vm2331 = vcmp.le.s32.totalorder %v2058, %v2057
    %vm2332 = vmor %vm2330, %vm2331
    %v2333 = vmax.f32 %v2329, 1.0
    %v2334 = vrcp.pop %v2333
    %v2335 = vmul.f32 1.0, %v2334
    %v2336 = vsel %vm2332, 0.0, %v2335
    %v2337 = vmul.f32 %v2325, %v2336
    %2338 = vst [vmem:[#allocation9 + $0x7] sm:$0x1] %v2337
    // Predicated region
    $region18: #{tpu_custom_call.1} parent=1 // pred_check
      _
    $region19: #{tpu_custom_call.1} parent=1 // pred_check_branch
      %2340 = sbr.rel (0) target = $region21
    $region20: #{tpu_custom_call.1} parent=1 // pred_region
      %s2342 = ssub.s32 128, 128
      %2343 = vsyncadd [#allocation6], %s2342
      %s2345 = sshll.u32 [#allocation9], 4
      %s2346 = int_to_ptr.vmem [resolvable:$true] %s2345
      %2348 = dma.vmem_to_hbm [thread:$0]  %s2346, 128, %s3, [#allocation6]
    $region21: #{tpu_custom_call.1} parent=1 // pred_fallthru
      _
    // Predicated region
    $region22: #{tpu_custom_call.1} parent=1 // pred_check
      _
    $region23: #{tpu_custom_call.1} parent=1 // pred_check_branch
      %2350 = sbr.rel (0) target = $region25
    $region24: #{tpu_custom_call.1} parent=1 // pred_region
      %2351 = dma.done [#allocation6], 128
    $region25: #{tpu_custom_call.1} parent=1 // pred_fallthru
      _
    %2352 = vsyncpa [#allocation5], 1
    %2353 = vsyncpa [#allocation8], 1
    %2354 = vsyncpa [#allocation6], 1

</llo_original>
